<compile_context>
chip_gen: v7x
topology: tpu7x:2x2x1
jax: 0.10.0
libtpu: 0.0.40
codegen_flags: <defaults>
</compile_context>

<pallas_src>
import functools
import math

import jax
import jax.numpy as jnp
from jax.experimental import pallas as pl
from jax.experimental.pallas import tpu as pltpu


def _round_up(x, m):
    return ((x + m - 1) // m) * m


_RESIDENT_VMEM_BUDGET = 40 * 1024 * 1024   # live-set cap for the resident-weight path


@functools.lru_cache(maxsize=None)
def _vmem_limit_bytes():
    """Per-generation scoped-VMEM limit (v5e/v6e: ~85 MiB, v7x: ~42 MiB)."""
    try:
        cap = int(pltpu.get_tpu_info().vmem_capacity_bytes)
    except Exception:
        return 32 * 1024 * 1024            # conservative default
    return int(min(cap * 2 // 3, 100 * 1024 * 1024))


# ------------------------------------------------------------------ kernels

def _linear_kernel(x_ref, w_ref, b_ref, o_ref, *, activation):
    """(tm, K) x (K, N) with the full weight resident; bias (+ReLU) epilogue."""
    y = jnp.dot(x_ref[...], w_ref[...], preferred_element_type=jnp.float32)
    y = y + b_ref[...]
    if activation == "relu":
        y = jnp.maximum(y, 0.0)
    o_ref[...] = y.astype(o_ref.dtype)


def _linear_acc_kernel(x_ref, w_ref, b_ref, o_ref, acc_ref, *, activation):
    """K/N-tiled matmul with f32 VMEM accumulator (large weights, e.g. vocab)."""
    k = pl.program_id(2)

    @pl.when(k == 0)
    def _():
        acc_ref[...] = jnp.zeros_like(acc_ref)

    acc_ref[...] += jnp.dot(x_ref[...], w_ref[...],
                            preferred_element_type=jnp.float32)

    @pl.when(k == pl.num_programs(2) - 1)
    def _():
        y = acc_ref[...] + b_ref[...]
        if activation == "relu":
            y = jnp.maximum(y, 0.0)
        o_ref[...] = y.astype(o_ref.dtype)


def _linear_add_ln_kernel(x_ref, w_ref, b_ref, r_ref, g_ref, bb_ref, o_ref, *, eps):
    """Matmul + bias + residual-add + LayerNorm, fused epilogue (resident weight)."""
    y = jnp.dot(x_ref[...], w_ref[...], preferred_element_type=jnp.float32)
    y = y + b_ref[...] + r_ref[...].astype(jnp.float32)
    mean = jnp.mean(y, axis=-1, keepdims=True)
    c = y - mean
    var = jnp.mean(c * c, axis=-1, keepdims=True)
    out = c * jax.lax.rsqrt(var + eps) * g_ref[...] + bb_ref[...]
    o_ref[...] = out.astype(o_ref.dtype)


def _attention_kernel(qkv_ref, o_ref, *, num_heads, hidden, scale, tq):
    """Self-attention for one batch element / one query block, all heads.

    qkv_ref block is (1, S, 3H) (fused q|k|v along the lane dim); o_ref block
    is (1, tq, H).  Heads and q/k/v are sliced out of the lane dimension, the
    softmax scale is applied to the f32 scores, and all head outputs are
    written with a single lane-dense store.
    """
    H = hidden
    Dh = H // num_heads
    S = qkv_ref.shape[1]
    row0 = pl.multiple_of(pl.program_id(1) * tq, tq)
    dn = (((1,), (1,)), ((), ()))   # contract last dims, no batch dims

    outs = []
    # TODO(synk): at large S / many heads, switch to a head-major layout (or a
    # fori_loop over heads) so per-head MXU operands are >=128 wide and live
    # ranges stay bounded; static offsets keep lane slices static here.
    for h in range(num_heads):
        lo = h * Dh
        if tq == S:
            qh = qkv_ref[0, :, lo:lo + Dh]                       # (tq, Dh) bf16
        else:
            qh = qkv_ref[0, pl.ds(row0, tq), lo:lo + Dh]
        kh = qkv_ref[0, :, H + lo:H + lo + Dh]                   # (S, Dh)
        vh = qkv_ref[0, :, 2 * H + lo:2 * H + lo + Dh]           # (S, Dh)

        s = jax.lax.dot_general(qh, kh, dn,
                                preferred_element_type=jnp.float32) * scale
        m = jnp.max(s, axis=-1, keepdims=True)
        p = jnp.exp(s - m)
        denom = jnp.sum(p, axis=-1, keepdims=True)
        p = p * pl.reciprocal(denom, approx=True)
        outs.append(jnp.dot(p.astype(vh.dtype), vh,
                            preferred_element_type=jnp.float32))  # (tq, Dh) f32

    o_ref[0] = jnp.concatenate(outs, axis=-1).astype(o_ref.dtype)


# ----------------------------------------------------------------- wrappers

def _choose_tm(M):
    tm = min(512, _round_up(M, 8))
    return tm, _round_up(M, tm)


def _choose_tk(K):
    """Never pad the reduction dim: pick a divisor of K (or K itself)."""
    if K <= 1024:
        return K
    for cand in (512, 384, 256, 128, 64):
        if K % cand == 0:
            return cand
    return K


def linear(x, w, b, activation=None, out_dtype=jnp.bfloat16):
    """x:[M,K] bf16 @ w:[K,N] bf16 (pre-padded) + b:[1,N] f32."""
    M, K = x.shape
    N = w.shape[1]
    tm, Mp = _choose_tm(M)

    xp = x if x.dtype == jnp.bfloat16 else x.astype(jnp.bfloat16)
    if Mp != M:
        xp = jnp.pad(xp, ((0, Mp - M), (0, 0)))

    vmem = _vmem_limit_bytes()
    out_bytes = jnp.dtype(out_dtype).itemsize
    # double-buffered live set if the whole weight is kept VMEM-resident
    resident_est = 2 * (tm * K * 2 + K * N * 2 + tm * N * out_bytes + N * 4)
    resident = resident_est <= min(vmem, _RESIDENT_VMEM_BUDGET)

    if resident:
        out = pl.pallas_call(
            functools.partial(_linear_kernel, activation=activation),
            out_shape=jax.ShapeDtypeStruct((Mp, N), out_dtype),
            grid=(Mp // tm,),
            in_specs=[
                pl.BlockSpec((tm, K), lambda i: (i, 0)),
                pl.BlockSpec((K, N), lambda i: (0, 0)),   # weight resident
                pl.BlockSpec((1, N), lambda i: (0, 0)),
            ],
            out_specs=pl.BlockSpec((tm, N), lambda i: (i, 0)),
            compiler_params=pltpu.CompilerParams(
                dimension_semantics=("parallel",), vmem_limit_bytes=vmem),
            cost_estimate=pl.CostEstimate(
                flops=2 * Mp * K * N, transcendentals=0,
                bytes_accessed=2 * (Mp * K + K * N + Mp * N)),
        )(xp, w, b)
    else:
        tk = _choose_tk(K)
        if N % 128 == 0:
            tn = next(t for t in (512, 256, 128) if N % t == 0)
        else:
            tn = N
        out = pl.pallas_call(
            functools.partial(_linear_acc_kernel, activation=activation),
            out_shape=jax.ShapeDtypeStruct((Mp, N), out_dtype),
            grid=(Mp // tm, N // tn, K // tk),
            in_specs=[
                pl.BlockSpec((tm, tk), lambda i, j, k: (i, k)),
                pl.BlockSpec((tk, tn), lambda i, j, k: (k, j)),
                pl.BlockSpec((1, tn), lambda i, j, k: (0, j)),
            ],
            out_specs=pl.BlockSpec((tm, tn), lambda i, j, k: (i, j)),
            scratch_shapes=[pltpu.VMEM((tm, tn), jnp.float32)],
            compiler_params=pltpu.CompilerParams(
                dimension_semantics=("parallel", "parallel", "arbitrary"),
                vmem_limit_bytes=vmem),
            cost_estimate=pl.CostEstimate(
                flops=2 * Mp * K * N, transcendentals=0,
                bytes_accessed=2 * (Mp * K + K * N + Mp * N)),
        )(xp, w, b)

    if Mp != M:
        out = out[:M]
    return out


def linear_add_layernorm(x, w, b, residual, gamma, beta, eps=1e-5):
    """(x @ w + b + residual) -> LayerNorm, fused; weight resident (N == H)."""
    M, K = x.shape
    N = w.shape[1]
    tm, Mp = _choose_tm(M)

    xp, rp = x, residual
    if Mp != M:
        xp = jnp.pad(xp, ((0, Mp - M), (0, 0)))
        rp = jnp.pad(rp, ((0, Mp - M), (0, 0)))

    out = pl.pallas_call(
        functools.partial(_linear_add_ln_kernel, eps=eps),
        out_shape=jax.ShapeDtypeStruct((Mp, N), jnp.bfloat16),
        grid=(Mp // tm,),
        in_specs=[
            pl.BlockSpec((tm, K), lambda i: (i, 0)),
            pl.BlockSpec((K, N), lambda i: (0, 0)),       # weight resident
            pl.BlockSpec((1, N), lambda i: (0, 0)),
            pl.BlockSpec((tm, N), lambda i: (i, 0)),      # residual
            pl.BlockSpec((1, N), lambda i: (0, 0)),       # gamma
            pl.BlockSpec((1, N), lambda i: (0, 0)),       # beta
        ],
        out_specs=pl.BlockSpec((tm, N), lambda i: (i, 0)),
        compiler_params=pltpu.CompilerParams(
            dimension_semantics=("parallel",), vmem_limit_bytes=_vmem_limit_bytes()),
        cost_estimate=pl.CostEstimate(
            flops=2 * Mp * K * N + 10 * Mp * N, transcendentals=Mp,
            bytes_accessed=2 * (Mp * K + K * N + 2 * Mp * N)),
    )(xp, w, b, rp, gamma, beta)

    if Mp != M:
        out = out[:M]
    return out


def attention(qkv, num_heads, hidden, scale):
    """qkv: [B, S, 3H] bf16 (fused) -> per-head softmax((q k^T)*scale) v, [B, S, H]."""
    B, S, threeH = qkv.shape
    if S <= 512:
        tq = S
    elif S % 512 == 0:
        tq = 512
    elif S % 256 == 0:
        tq = 256
    else:
        tq = S

    return pl.pallas_call(
        functools.partial(_attention_kernel, num_heads=num_heads,
                          hidden=hidden, scale=scale, tq=tq),
        out_shape=jax.ShapeDtypeStruct((B, S, hidden), jnp.bfloat16),
        grid=(B, S // tq),
        in_specs=[pl.BlockSpec((1, S, threeH), lambda b, qi: (b, 0, 0))],
        out_specs=pl.BlockSpec((1, tq, hidden), lambda b, qi: (b, qi, 0)),
        compiler_params=pltpu.CompilerParams(
            dimension_semantics=("parallel", "parallel"),
            vmem_limit_bytes=_vmem_limit_bytes()),
    )(qkv)


# ------------------------------------------------------------------- model

def encoder_layer(x, p, num_heads):
    """One nn.TransformerEncoderLayer (post-norm, ReLU FFN, dropout=identity)."""
    B, S, H = x.shape
    x2 = x.reshape(B * S, H)

    # fused Q/K/V projection; fed to attention without any JAX slicing
    qkv = linear(x2, p["w_qkv"], p["b_qkv"])                    # [B*S, 3H] bf16
    attn = attention(qkv.reshape(B, S, 3 * H), num_heads, H,
                     1.0 / math.sqrt(H // num_heads))

    # out-proj + residual + LayerNorm (norm1), fused epilogue
    y = linear_add_layernorm(attn.reshape(B * S, H), p["wo"], p["bo"],
                             x2, p["ln1_g"], p["ln1_b"])

    # FFN: linear -> ReLU -> (linear + residual + LayerNorm (norm2), fused)
    h = linear(y, p["w1"], p["b1"], activation="relu")
    out = linear_add_layernorm(h, p["w2"], p["b2"], y, p["ln2_g"], p["ln2_b"])
    return out.reshape(B, S, H)


def bert_forward(params, tokens, *, num_heads, num_layers, vocab_size):
    B, S = tokens.shape
    H = params["tok_emb"].shape[1]

    # token + position embeddings (gather stays in plain JAX glue)
    positions = jnp.arange(S)
    x = (params["tok_emb"][tokens]
         + params["pos_emb"][positions][None, :, :]).astype(jnp.bfloat16)
    # self.dropout(x) -> identity at inference

    # TODO(synk): the PyTorch forward builds a padding mask from the embedded
    # floats (and undefined names) and never passes it to the encoder; omitted.

    for l in range(num_layers):
        x = encoder_layer(x, params["layers"][l], num_heads)

    logits = linear(x.reshape(B * S, H), params["fc_w"], params["fc_b"],
                    out_dtype=jnp.float32)
    if logits.shape[1] != vocab_size:
        logits = logits[:, :vocab_size]                  # strip lane padding
    return logits.reshape(B, S, vocab_size)


# ------------------------------------------------------------------- params

def init_params(key, vocab_size, hidden_size, num_layers):
    """Parameters in kernel-ready form: bf16 weights (classifier pre-padded to a
    multiple of 128 lanes), f32 biases / LN params pre-shaped to (1, N)."""
    H = hidden_size
    keys = iter(jax.random.split(key, 4 + num_layers * 8))

    def w(shape, scale=0.05):
        return scale * jax.random.normal(next(keys), shape, jnp.float32)

    # TODO(synk): on v7x the projection/FFN weights could be stored fp8 for ~2x
    # MXU throughput; kept bf16 here so one weight format runs on v5e/v6e/v7x.
    Np = _round_up(vocab_size, 128)
    fc_w = jnp.pad(w((H, vocab_size)), ((0, 0), (0, Np - vocab_size)))

    params = {
        "tok_emb": w((1000, H), 0.02).astype(jnp.bfloat16),
        "pos_emb": w((1000, H), 0.02).astype(jnp.bfloat16),
        "fc_w": fc_w.astype(jnp.bfloat16),
        "fc_b": jnp.zeros((1, Np), jnp.float32),
        "layers": [],
    }
    for _ in range(num_layers):
        wq, wk, wv = w((H, H)), w((H, H)), w((H, H))
        layer = {
            "w_qkv": jnp.concatenate([wq, wk, wv], axis=1).astype(jnp.bfloat16),
            "b_qkv": jnp.zeros((1, 3 * H), jnp.float32),
            "wo": w((H, H)).astype(jnp.bfloat16),
            "bo": jnp.zeros((1, H), jnp.float32),
            "ln1_g": jnp.ones((1, H), jnp.float32),
            "ln1_b": jnp.zeros((1, H), jnp.float32),
            # dim_feedforward == hidden_size (the spec passes hidden_size)
            "w1": w((H, H)).astype(jnp.bfloat16),
            "b1": jnp.zeros((1, H), jnp.float32),
            "w2": w((H, H)).astype(jnp.bfloat16),
            "b2": jnp.zeros((1, H), jnp.float32),
            "ln2_g": jnp.ones((1, H), jnp.float32),
            "ln2_b": jnp.zeros((1, H), jnp.float32),
        }
        params["layers"].append(layer)
    return params


# --------------------------------------------------------------------- main

if __name__ == "__main__":
    vocab_size = 50
    hidden_size = 32
    num_layers = 2
    num_heads = 4

    key = jax.random.PRNGKey(0)
    pkey, tkey = jax.random.split(key)

    params = init_params(pkey, vocab_size, hidden_size, num_layers)

    B, S = 2, 8
    tokens = jax.random.randint(tkey, (B, S), 0, 1000, dtype=jnp.int32)

    fwd = jax.jit(functools.partial(bert_forward, num_heads=num_heads,
                                    num_layers=num_layers, vocab_size=vocab_size))
    out = jax.block_until_ready(fwd(params, tokens))

    assert out.shape == (B, S, vocab_size), out.shape
    assert jnp.all(jnp.isfinite(out))
    print("KERNEL_OK")
</pallas_src>

<mosaic_0001>
module attributes {stable_mosaic.version = 11 : i64} {
  func.func @_linear_kernel(%arg0: i32, %arg1: memref<16x32xbf16, #tpu.memory_space<vmem>>, %arg2: memref<32x96xbf16, #tpu.memory_space<vmem>>, %arg3: memref<1x96xf32, #tpu.memory_space<vmem>>, %arg4: memref<16x96xbf16, #tpu.memory_space<vmem>>) attributes {dimension_semantics = [#tpu.dimension_semantics<parallel>], iteration_bounds = array<i64: 1>, scalar_prefetch = 0 : i64, scratch_operands = 0 : i64, tpu.core_type = #tpu.core_type<tc>, window_params = [{transform_indices = @transform_0, window_bounds = array<i64: 16, 32>}, {pipeline_mode = #tpu.pipeline_mode<synchronous>, transform_indices = @transform_1, window_bounds = array<i64: 32, 96>}, {pipeline_mode = #tpu.pipeline_mode<synchronous>, transform_indices = @transform_2, window_bounds = array<i64: 1, 96>}, {transform_indices = @transform_3, window_bounds = array<i64: 16, 96>}]} {
    %c0 = arith.constant 0 : index
    %c0_0 = arith.constant 0 : index
    %0 = vector.load %arg1[%c0, %c0_0] : memref<16x32xbf16, #tpu.memory_space<vmem>>, vector<16x32xbf16>
    %c0_1 = arith.constant 0 : index
    %c0_2 = arith.constant 0 : index
    %1 = vector.load %arg2[%c0_1, %c0_2] : memref<32x96xbf16, #tpu.memory_space<vmem>>, vector<32x96xbf16>
    %cst = arith.constant dense<0.000000e+00> : vector<16x96xf32>
    %2 = tpu.matmul %0, %1, %cst {dimension_numbers = #tpu.dot_dimension_numbers<[1], [0], [0], [1], [0, 0, 1, 1], [], []>} : vector<16x32xbf16>, vector<32x96xbf16>, vector<16x96xf32> -> vector<16x96xf32>
    %c0_3 = arith.constant 0 : index
    %c0_4 = arith.constant 0 : index
    %3 = vector.load %arg3[%c0_3, %c0_4] : memref<1x96xf32, #tpu.memory_space<vmem>>, vector<1x96xf32>
    %4 = vector.broadcast %3 : vector<1x96xf32> to vector<16x96xf32>
    %5 = arith.addf %2, %4 : vector<16x96xf32>
    %6 = arith.truncf %5 : vector<16x96xf32> to vector<16x96xbf16>
    %c0_5 = arith.constant 0 : index
    %c0_6 = arith.constant 0 : index
    %7 = vector.load %arg4[%c0_5, %c0_6] : memref<16x96xbf16, #tpu.memory_space<vmem>>, vector<16x96xbf16>
    tpu.vector_store %arg4[%c0_5, %c0_6], %6 {strides = array<i32>} : memref<16x96xbf16, #tpu.memory_space<vmem>>, vector<16x96xbf16>,
    return
  }
  func.func @transform_0(%arg0: i32) -> (i32, i32) {
    %c0_i32 = arith.constant 0 : i32
    %c0_i32_0 = arith.constant 0 : i32
    return %arg0, %c0_i32 : i32, i32
  }
  func.func @transform_1(%arg0: i32) -> (i32, i32) {
    %c0_i32 = arith.constant 0 : i32
    %c0_i32_0 = arith.constant 0 : i32
    %c0_i32_1 = arith.constant 0 : i32
    return %c0_i32, %c0_i32_0 : i32, i32
  }
  func.func @transform_2(%arg0: i32) -> (i32, i32) {
    %c0_i32 = arith.constant 0 : i32
    %c0_i32_0 = arith.constant 0 : i32
    %c0_i32_1 = arith.constant 0 : i32
    return %c0_i32, %c0_i32_0 : i32, i32
  }
  func.func @transform_3(%arg0: i32) -> (i32, i32) {
    %c0_i32 = arith.constant 0 : i32
    %c0_i32_0 = arith.constant 0 : i32
    return %arg0, %c0_i32 : i32, i32
  }
}

module attributes {stable_mosaic.version = 11 : i64} {
  func.func @_linear_kernel(%arg0: i32, %arg1: memref<16x32xbf16, #tpu.memory_space<vmem>>, %arg2: memref<32x32xbf16, #tpu.memory_space<vmem>>, %arg3: memref<1x32xf32, #tpu.memory_space<vmem>>, %arg4: memref<16x32xbf16, #tpu.memory_space<vmem>>) attributes {dimension_semantics = [#tpu.dimension_semantics<parallel>], iteration_bounds = array<i64: 1>, scalar_prefetch = 0 : i64, scratch_operands = 0 : i64, tpu.core_type = #tpu.core_type<tc>, window_params = [{transform_indices = @transform_0, window_bounds = array<i64: 16, 32>}, {pipeline_mode = #tpu.pipeline_mode<synchronous>, transform_indices = @transform_1, window_bounds = array<i64: 32, 32>}, {pipeline_mode = #tpu.pipeline_mode<synchronous>, transform_indices = @transform_2, window_bounds = array<i64: 1, 32>}, {transform_indices = @transform_3, window_bounds = array<i64: 16, 32>}]} {
    %c0 = arith.constant 0 : index
    %c0_0 = arith.constant 0 : index
    %0 = vector.load %arg1[%c0, %c0_0] : memref<16x32xbf16, #tpu.memory_space<vmem>>, vector<16x32xbf16>
    %c0_1 = arith.constant 0 : index
    %c0_2 = arith.constant 0 : index
    %1 = vector.load %arg2[%c0_1, %c0_2] : memref<32x32xbf16, #tpu.memory_space<vmem>>, vector<32x32xbf16>
    %cst = arith.constant dense<0.000000e+00> : vector<16x32xf32>
    %2 = tpu.matmul %0, %1, %cst {dimension_numbers = #tpu.dot_dimension_numbers<[1], [0], [0], [1], [0, 0, 1, 1], [], []>} : vector<16x32xbf16>, vector<32x32xbf16>, vector<16x32xf32> -> vector<16x32xf32>
    %c0_3 = arith.constant 0 : index
    %c0_4 = arith.constant 0 : index
    %3 = vector.load %arg3[%c0_3, %c0_4] : memref<1x32xf32, #tpu.memory_space<vmem>>, vector<1x32xf32>
    %4 = vector.broadcast %3 : vector<1x32xf32> to vector<16x32xf32>
    %5 = arith.addf %2, %4 : vector<16x32xf32>
    %cst_5 = arith.constant 0.000000e+00 : f32
    %6 = vector.broadcast %cst_5 : f32 to vector<16x32xf32>
    %7 = arith.maximumf %5, %6 : vector<16x32xf32>
    %8 = arith.truncf %7 : vector<16x32xf32> to vector<16x32xbf16>
    %c0_6 = arith.constant 0 : index
    %c0_7 = arith.constant 0 : index
    %9 = vector.load %arg4[%c0_6, %c0_7] : memref<16x32xbf16, #tpu.memory_space<vmem>>, vector<16x32xbf16>
    tpu.vector_store %arg4[%c0_6, %c0_7], %8 {strides = array<i32>} : memref<16x32xbf16, #tpu.memory_space<vmem>>, vector<16x32xbf16>,
    return
  }
  func.func @transform_0(%arg0: i32) -> (i32, i32) {
    %c0_i32 = arith.constant 0 : i32
    %c0_i32_0 = arith.constant 0 : i32
    return %arg0, %c0_i32 : i32, i32
  }
  func.func @transform_1(%arg0: i32) -> (i32, i32) {
    %c0_i32 = arith.constant 0 : i32
    %c0_i32_0 = arith.constant 0 : i32
    %c0_i32_1 = arith.constant 0 : i32
    return %c0_i32, %c0_i32_0 : i32, i32
  }
  func.func @transform_2(%arg0: i32) -> (i32, i32) {
    %c0_i32 = arith.constant 0 : i32
    %c0_i32_0 = arith.constant 0 : i32
    %c0_i32_1 = arith.constant 0 : i32
    return %c0_i32, %c0_i32_0 : i32, i32
  }
  func.func @transform_3(%arg0: i32) -> (i32, i32) {
    %c0_i32 = arith.constant 0 : i32
    %c0_i32_0 = arith.constant 0 : i32
    return %arg0, %c0_i32 : i32, i32
  }
}

module attributes {stable_mosaic.version = 11 : i64} {
  func.func @_attention_kernel(%arg0: i32, %arg1: i32, %arg2: memref<1x8x96xbf16, #tpu.memory_space<vmem>>, %arg3: memref<1x8x32xbf16, #tpu.memory_space<vmem>>) attributes {dimension_semantics = [#tpu.dimension_semantics<parallel>, #tpu.dimension_semantics<parallel>], iteration_bounds = array<i64: 2, 1>, scalar_prefetch = 0 : i64, scratch_operands = 0 : i64, tpu.core_type = #tpu.core_type<tc>, window_params = [{transform_indices = @transform_0, window_bounds = array<i64: 1, 8, 96>}, {transform_indices = @transform_1, window_bounds = array<i64: 1, 8, 32>}]} {
    %c0 = arith.constant 0 : index
    %c0_0 = arith.constant 0 : index
    %c0_1 = arith.constant 0 : index
    %0 = vector.load %arg2[%c0, %c0_0, %c0_1] : memref<1x8x96xbf16, #tpu.memory_space<vmem>>, vector<1x8x8xbf16>
    %1 = vector.shape_cast %0 : vector<1x8x8xbf16> to vector<8x8xbf16>
    %c0_2 = arith.constant 0 : index
    %c0_3 = arith.constant 0 : index
    %c32 = arith.constant 32 : index
    %2 = vector.load %arg2[%c0_2, %c0_3, %c32] : memref<1x8x96xbf16, #tpu.memory_space<vmem>>, vector<1x8x8xbf16>
    %3 = vector.shape_cast %2 : vector<1x8x8xbf16> to vector<8x8xbf16>
    %c0_4 = arith.constant 0 : index
    %c0_5 = arith.constant 0 : index
    %c64 = arith.constant 64 : index
    %4 = vector.load %arg2[%c0_4, %c0_5, %c64] : memref<1x8x96xbf16, #tpu.memory_space<vmem>>, vector<1x8x8xbf16>
    %5 = vector.shape_cast %4 : vector<1x8x8xbf16> to vector<8x8xbf16>
    %cst = arith.constant dense<0.000000e+00> : vector<8x8xf32>
    %6 = tpu.matmul %1, %3, %cst {dimension_numbers = #tpu.dot_dimension_numbers<[1], [1], [0], [0], [0, 0, 1, 0], [], []>} : vector<8x8xbf16>, vector<8x8xbf16>, vector<8x8xf32> -> vector<8x8xf32>
    %cst_6 = arith.constant 0.353553385 : f32
    %7 = vector.broadcast %cst_6 : f32 to vector<8x8xf32>
    %8 = arith.mulf %6, %7 : vector<8x8xf32>
    %cst_7 = arith.constant dense<0xFF800000> : vector<8xf32>
    %9 = vector.multi_reduction <maximumf>, %8, %cst_7 [1] : vector<8x8xf32> to vector<8xf32>
    %10 = vector.shape_cast %9 : vector<8xf32> to vector<8x1xf32>
    %11 = vector.broadcast %10 : vector<8x1xf32> to vector<8x8xf32>
    %12 = arith.subf %8, %11 : vector<8x8xf32>
    %13 = math.exp %12 : vector<8x8xf32>
    %cst_8 = arith.constant dense<0.000000e+00> : vector<8xf32>
    %14 = vector.multi_reduction <add>, %13, %cst_8 [1] : vector<8x8xf32> to vector<8xf32>
    %15 = vector.shape_cast %14 : vector<8xf32> to vector<8x1xf32>
    %16 = tpu.reciprocal %15 {approx = true} : vector<8x1xf32> -> vector<8x1xf32>
    %17 = vector.broadcast %16 : vector<8x1xf32> to vector<8x8xf32>
    %18 = arith.mulf %13, %17 : vector<8x8xf32>
    %19 = arith.truncf %18 : vector<8x8xf32> to vector<8x8xbf16>
    %cst_9 = arith.constant dense<0.000000e+00> : vector<8x8xf32>
    %20 = tpu.matmul %19, %5, %cst_9 {dimension_numbers = #tpu.dot_dimension_numbers<[1], [0], [0], [1], [0, 0, 1, 1], [], []>} : vector<8x8xbf16>, vector<8x8xbf16>, vector<8x8xf32> -> vector<8x8xf32>
    %c0_10 = arith.constant 0 : index
    %c0_11 = arith.constant 0 : index
    %c8 = arith.constant 8 : index
    %21 = vector.load %arg2[%c0_10, %c0_11, %c8] : memref<1x8x96xbf16, #tpu.memory_space<vmem>>, vector<1x8x8xbf16>
    %22 = vector.shape_cast %21 : vector<1x8x8xbf16> to vector<8x8xbf16>
    %c0_12 = arith.constant 0 : index
    %c0_13 = arith.constant 0 : index
    %c40 = arith.constant 40 : index
    %23 = vector.load %arg2[%c0_12, %c0_13, %c40] : memref<1x8x96xbf16, #tpu.memory_space<vmem>>, vector<1x8x8xbf16>
    %24 = vector.shape_cast %23 : vector<1x8x8xbf16> to vector<8x8xbf16>
    %c0_14 = arith.constant 0 : index
    %c0_15 = arith.constant 0 : index
    %c72 = arith.constant 72 : index
    %25 = vector.load %arg2[%c0_14, %c0_15, %c72] : memref<1x8x96xbf16, #tpu.memory_space<vmem>>, vector<1x8x8xbf16>
    %26 = vector.shape_cast %25 : vector<1x8x8xbf16> to vector<8x8xbf16>
    %cst_16 = arith.constant dense<0.000000e+00> : vector<8x8xf32>
    %27 = tpu.matmul %22, %24, %cst_16 {dimension_numbers = #tpu.dot_dimension_numbers<[1], [1], [0], [0], [0, 0, 1, 0], [], []>} : vector<8x8xbf16>, vector<8x8xbf16>, vector<8x8xf32> -> vector<8x8xf32>
    %cst_17 = arith.constant 0.353553385 : f32
    %28 = vector.broadcast %cst_17 : f32 to vector<8x8xf32>
    %29 = arith.mulf %27, %28 : vector<8x8xf32>
    %cst_18 = arith.constant dense<0xFF800000> : vector<8xf32>
    %30 = vector.multi_reduction <maximumf>, %29, %cst_18 [1] : vector<8x8xf32> to vector<8xf32>
    %31 = vector.shape_cast %30 : vector<8xf32> to vector<8x1xf32>
    %32 = vector.broadcast %31 : vector<8x1xf32> to vector<8x8xf32>
    %33 = arith.subf %29, %32 : vector<8x8xf32>
    %34 = math.exp %33 : vector<8x8xf32>
    %cst_19 = arith.constant dense<0.000000e+00> : vector<8xf32>
    %35 = vector.multi_reduction <add>, %34, %cst_19 [1] : vector<8x8xf32> to vector<8xf32>
    %36 = vector.shape_cast %35 : vector<8xf32> to vector<8x1xf32>
    %37 = tpu.reciprocal %36 {approx = true} : vector<8x1xf32> -> vector<8x1xf32>
    %38 = vector.broadcast %37 : vector<8x1xf32> to vector<8x8xf32>
    %39 = arith.mulf %34, %38 : vector<8x8xf32>
    %40 = arith.truncf %39 : vector<8x8xf32> to vector<8x8xbf16>
    %cst_20 = arith.constant dense<0.000000e+00> : vector<8x8xf32>
    %41 = tpu.matmul %40, %26, %cst_20 {dimension_numbers = #tpu.dot_dimension_numbers<[1], [0], [0], [1], [0, 0, 1, 1], [], []>} : vector<8x8xbf16>, vector<8x8xbf16>, vector<8x8xf32> -> vector<8x8xf32>
    %c0_21 = arith.constant 0 : index
    %c0_22 = arith.constant 0 : index
    %c16 = arith.constant 16 : index
    %42 = vector.load %arg2[%c0_21, %c0_22, %c16] : memref<1x8x96xbf16, #tpu.memory_space<vmem>>, vector<1x8x8xbf16>
    %43 = vector.shape_cast %42 : vector<1x8x8xbf16> to vector<8x8xbf16>
    %c0_23 = arith.constant 0 : index
    %c0_24 = arith.constant 0 : index
    %c48 = arith.constant 48 : index
    %44 = vector.load %arg2[%c0_23, %c0_24, %c48] : memref<1x8x96xbf16, #tpu.memory_space<vmem>>, vector<1x8x8xbf16>
    %45 = vector.shape_cast %44 : vector<1x8x8xbf16> to vector<8x8xbf16>
    %c0_25 = arith.constant 0 : index
    %c0_26 = arith.constant 0 : index
    %c80 = arith.constant 80 : index
    %46 = vector.load %arg2[%c0_25, %c0_26, %c80] : memref<1x8x96xbf16, #tpu.memory_space<vmem>>, vector<1x8x8xbf16>
    %47 = vector.shape_cast %46 : vector<1x8x8xbf16> to vector<8x8xbf16>
    %cst_27 = arith.constant dense<0.000000e+00> : vector<8x8xf32>
    %48 = tpu.matmul %43, %45, %cst_27 {dimension_numbers = #tpu.dot_dimension_numbers<[1], [1], [0], [0], [0, 0, 1, 0], [], []>} : vector<8x8xbf16>, vector<8x8xbf16>, vector<8x8xf32> -> vector<8x8xf32>
    %cst_28 = arith.constant 0.353553385 : f32
    %49 = vector.broadcast %cst_28 : f32 to vector<8x8xf32>
    %50 = arith.mulf %48, %49 : vector<8x8xf32>
    %cst_29 = arith.constant dense<0xFF800000> : vector<8xf32>
    %51 = vector.multi_reduction <maximumf>, %50, %cst_29 [1] : vector<8x8xf32> to vector<8xf32>
    %52 = vector.shape_cast %51 : vector<8xf32> to vector<8x1xf32>
    %53 = vector.broadcast %52 : vector<8x1xf32> to vector<8x8xf32>
    %54 = arith.subf %50, %53 : vector<8x8xf32>
    %55 = math.exp %54 : vector<8x8xf32>
    %cst_30 = arith.constant dense<0.000000e+00> : vector<8xf32>
    %56 = vector.multi_reduction <add>, %55, %cst_30 [1] : vector<8x8xf32> to vector<8xf32>
    %57 = vector.shape_cast %56 : vector<8xf32> to vector<8x1xf32>
    %58 = tpu.reciprocal %57 {approx = true} : vector<8x1xf32> -> vector<8x1xf32>
    %59 = vector.broadcast %58 : vector<8x1xf32> to vector<8x8xf32>
    %60 = arith.mulf %55, %59 : vector<8x8xf32>
    %61 = arith.truncf %60 : vector<8x8xf32> to vector<8x8xbf16>
    %cst_31 = arith.constant dense<0.000000e+00> : vector<8x8xf32>
    %62 = tpu.matmul %61, %47, %cst_31 {dimension_numbers = #tpu.dot_dimension_numbers<[1], [0], [0], [1], [0, 0, 1, 1], [], []>} : vector<8x8xbf16>, vector<8x8xbf16>, vector<8x8xf32> -> vector<8x8xf32>
    %c0_32 = arith.constant 0 : index
    %c0_33 = arith.constant 0 : index
    %c24 = arith.constant 24 : index
    %63 = vector.load %arg2[%c0_32, %c0_33, %c24] : memref<1x8x96xbf16, #tpu.memory_space<vmem>>, vector<1x8x8xbf16>
    %64 = vector.shape_cast %63 : vector<1x8x8xbf16> to vector<8x8xbf16>
    %c0_34 = arith.constant 0 : index
    %c0_35 = arith.constant 0 : index
    %c56 = arith.constant 56 : index
    %65 = vector.load %arg2[%c0_34, %c0_35, %c56] : memref<1x8x96xbf16, #tpu.memory_space<vmem>>, vector<1x8x8xbf16>
    %66 = vector.shape_cast %65 : vector<1x8x8xbf16> to vector<8x8xbf16>
    %c0_36 = arith.constant 0 : index
    %c0_37 = arith.constant 0 : index
    %c88 = arith.constant 88 : index
    %67 = vector.load %arg2[%c0_36, %c0_37, %c88] : memref<1x8x96xbf16, #tpu.memory_space<vmem>>, vector<1x8x8xbf16>
    %68 = vector.shape_cast %67 : vector<1x8x8xbf16> to vector<8x8xbf16>
    %cst_38 = arith.constant dense<0.000000e+00> : vector<8x8xf32>
    %69 = tpu.matmul %64, %66, %cst_38 {dimension_numbers = #tpu.dot_dimension_numbers<[1], [1], [0], [0], [0, 0, 1, 0], [], []>} : vector<8x8xbf16>, vector<8x8xbf16>, vector<8x8xf32> -> vector<8x8xf32>
    %cst_39 = arith.constant 0.353553385 : f32
    %70 = vector.broadcast %cst_39 : f32 to vector<8x8xf32>
    %71 = arith.mulf %69, %70 : vector<8x8xf32>
    %cst_40 = arith.constant dense<0xFF800000> : vector<8xf32>
    %72 = vector.multi_reduction <maximumf>, %71, %cst_40 [1] : vector<8x8xf32> to vector<8xf32>
    %73 = vector.shape_cast %72 : vector<8xf32> to vector<8x1xf32>
    %74 = vector.broadcast %73 : vector<8x1xf32> to vector<8x8xf32>
    %75 = arith.subf %71, %74 : vector<8x8xf32>
    %76 = math.exp %75 : vector<8x8xf32>
    %cst_41 = arith.constant dense<0.000000e+00> : vector<8xf32>
    %77 = vector.multi_reduction <add>, %76, %cst_41 [1] : vector<8x8xf32> to vector<8xf32>
    %78 = vector.shape_cast %77 : vector<8xf32> to vector<8x1xf32>
    %79 = tpu.reciprocal %78 {approx = true} : vector<8x1xf32> -> vector<8x1xf32>
    %80 = vector.broadcast %79 : vector<8x1xf32> to vector<8x8xf32>
    %81 = arith.mulf %76, %80 : vector<8x8xf32>
    %82 = arith.truncf %81 : vector<8x8xf32> to vector<8x8xbf16>
    %cst_42 = arith.constant dense<0.000000e+00> : vector<8x8xf32>
    %83 = tpu.matmul %82, %68, %cst_42 {dimension_numbers = #tpu.dot_dimension_numbers<[1], [0], [0], [1], [0, 0, 1, 1], [], []>} : vector<8x8xbf16>, vector<8x8xbf16>, vector<8x8xf32> -> vector<8x8xf32>
    %84 = tpu.concatenate %20, %41, %62, %83 in 1 : vector<8x8xf32>, vector<8x8xf32>, vector<8x8xf32>, vector<8x8xf32> -> vector<8x32xf32>
    %85 = arith.truncf %84 : vector<8x32xf32> to vector<8x32xbf16>
    %c0_43 = arith.constant 0 : index
    %c0_44 = arith.constant 0 : index
    %c0_45 = arith.constant 0 : index
    %86 = vector.load %arg3[%c0_43, %c0_44, %c0_45] : memref<1x8x32xbf16, #tpu.memory_space<vmem>>, vector<1x8x32xbf16>
    %87 = vector.shape_cast %86 : vector<1x8x32xbf16> to vector<8x32xbf16>
    %88 = vector.shape_cast %85 : vector<8x32xbf16> to vector<1x8x32xbf16>
    tpu.vector_store %arg3[%c0_43, %c0_44, %c0_45], %88 {strides = array<i32>} : memref<1x8x32xbf16, #tpu.memory_space<vmem>>, vector<1x8x32xbf16>,
    return
  }
  func.func @transform_0(%arg0: i32, %arg1: i32) -> (i32, i32, i32) {
    %c0_i32 = arith.constant 0 : i32
    %c0_i32_0 = arith.constant 0 : i32
    %c0_i32_1 = arith.constant 0 : i32
    return %arg0, %c0_i32, %c0_i32_0 : i32, i32, i32
  }
  func.func @transform_1(%arg0: i32, %arg1: i32) -> (i32, i32, i32) {
    %c0_i32 = arith.constant 0 : i32
    %c0_i32_0 = arith.constant 0 : i32
    return %arg0, %arg1, %c0_i32 : i32, i32, i32
  }
}

module attributes {stable_mosaic.version = 11 : i64} {
  func.func @_linear_add_ln_kernel(%arg0: i32, %arg1: memref<16x32xbf16, #tpu.memory_space<vmem>>, %arg2: memref<32x32xbf16, #tpu.memory_space<vmem>>, %arg3: memref<1x32xf32, #tpu.memory_space<vmem>>, %arg4: memref<16x32xbf16, #tpu.memory_space<vmem>>, %arg5: memref<1x32xf32, #tpu.memory_space<vmem>>, %arg6: memref<1x32xf32, #tpu.memory_space<vmem>>, %arg7: memref<16x32xbf16, #tpu.memory_space<vmem>>) attributes {dimension_semantics = [#tpu.dimension_semantics<parallel>], iteration_bounds = array<i64: 1>, scalar_prefetch = 0 : i64, scratch_operands = 0 : i64, tpu.core_type = #tpu.core_type<tc>, window_params = [{transform_indices = @transform_0, window_bounds = array<i64: 16, 32>}, {pipeline_mode = #tpu.pipeline_mode<synchronous>, transform_indices = @transform_1, window_bounds = array<i64: 32, 32>}, {pipeline_mode = #tpu.pipeline_mode<synchronous>, transform_indices = @transform_2, window_bounds = array<i64: 1, 32>}, {transform_indices = @transform_3, window_bounds = array<i64: 16, 32>}, {pipeline_mode = #tpu.pipeline_mode<synchronous>, transform_indices = @transform_4, window_bounds = array<i64: 1, 32>}, {pipeline_mode = #tpu.pipeline_mode<synchronous>, transform_indices = @transform_5, window_bounds = array<i64: 1, 32>}, {transform_indices = @transform_6, window_bounds = array<i64: 16, 32>}]} {
    %c0 = arith.constant 0 : index
    %c0_0 = arith.constant 0 : index
    %0 = vector.load %arg1[%c0, %c0_0] : memref<16x32xbf16, #tpu.memory_space<vmem>>, vector<16x32xbf16>
    %c0_1 = arith.constant 0 : index
    %c0_2 = arith.constant 0 : index
    %1 = vector.load %arg2[%c0_1, %c0_2] : memref<32x32xbf16, #tpu.memory_space<vmem>>, vector<32x32xbf16>
    %cst = arith.constant dense<0.000000e+00> : vector<16x32xf32>
    %2 = tpu.matmul %0, %1, %cst {dimension_numbers = #tpu.dot_dimension_numbers<[1], [0], [0], [1], [0, 0, 1, 1], [], []>} : vector<16x32xbf16>, vector<32x32xbf16>, vector<16x32xf32> -> vector<16x32xf32>
    %c0_3 = arith.constant 0 : index
    %c0_4 = arith.constant 0 : index
    %3 = vector.load %arg3[%c0_3, %c0_4] : memref<1x32xf32, #tpu.memory_space<vmem>>, vector<1x32xf32>
    %4 = vector.broadcast %3 : vector<1x32xf32> to vector<16x32xf32>
    %5 = arith.addf %2, %4 : vector<16x32xf32>
    %c0_5 = arith.constant 0 : index
    %c0_6 = arith.constant 0 : index
    %6 = vector.load %arg4[%c0_5, %c0_6] : memref<16x32xbf16, #tpu.memory_space<vmem>>, vector<16x32xbf16>
    %7 = arith.extf %6 : vector<16x32xbf16> to vector<16x32xf32>
    %8 = arith.addf %5, %7 : vector<16x32xf32>
    %cst_7 = arith.constant dense<0.000000e+00> : vector<16xf32>
    %9 = vector.multi_reduction <add>, %8, %cst_7 [1] : vector<16x32xf32> to vector<16xf32>
    %10 = vector.shape_cast %9 : vector<16xf32> to vector<16x1xf32>
    %cst_8 = arith.constant 3.200000e+01 : f32
    %11 = vector.broadcast %cst_8 : f32 to vector<16x1xf32>
    %12 = arith.divf %10, %11 : vector<16x1xf32>
    %13 = vector.broadcast %12 : vector<16x1xf32> to vector<16x32xf32>
    %14 = arith.subf %8, %13 : vector<16x32xf32>
    %15 = arith.mulf %14, %14 : vector<16x32xf32>
    %cst_9 = arith.constant dense<0.000000e+00> : vector<16xf32>
    %16 = vector.multi_reduction <add>, %15, %cst_9 [1] : vector<16x32xf32> to vector<16xf32>
    %17 = vector.shape_cast %16 : vector<16xf32> to vector<16x1xf32>
    %cst_10 = arith.constant 3.200000e+01 : f32
    %18 = vector.broadcast %cst_10 : f32 to vector<16x1xf32>
    %19 = arith.divf %17, %18 : vector<16x1xf32>
    %cst_11 = arith.constant 9.99999974E-6 : f32
    %20 = vector.broadcast %cst_11 : f32 to vector<16x1xf32>
    %21 = arith.addf %19, %20 : vector<16x1xf32>
    %22 = math.rsqrt %21 : vector<16x1xf32>
    %23 = vector.broadcast %22 : vector<16x1xf32> to vector<16x32xf32>
    %24 = arith.mulf %14, %23 : vector<16x32xf32>
    %c0_12 = arith.constant 0 : index
    %c0_13 = arith.constant 0 : index
    %25 = vector.load %arg5[%c0_12, %c0_13] : memref<1x32xf32, #tpu.memory_space<vmem>>, vector<1x32xf32>
    %26 = vector.broadcast %25 : vector<1x32xf32> to vector<16x32xf32>
    %27 = arith.mulf %24, %26 : vector<16x32xf32>
    %c0_14 = arith.constant 0 : index
    %c0_15 = arith.constant 0 : index
    %28 = vector.load %arg6[%c0_14, %c0_15] : memref<1x32xf32, #tpu.memory_space<vmem>>, vector<1x32xf32>
    %29 = vector.broadcast %28 : vector<1x32xf32> to vector<16x32xf32>
    %30 = arith.addf %27, %29 : vector<16x32xf32>
    %31 = arith.truncf %30 : vector<16x32xf32> to vector<16x32xbf16>
    %c0_16 = arith.constant 0 : index
    %c0_17 = arith.constant 0 : index
    %32 = vector.load %arg7[%c0_16, %c0_17] : memref<16x32xbf16, #tpu.memory_space<vmem>>, vector<16x32xbf16>
    tpu.vector_store %arg7[%c0_16, %c0_17], %31 {strides = array<i32>} : memref<16x32xbf16, #tpu.memory_space<vmem>>, vector<16x32xbf16>,
    return
  }
  func.func @transform_0(%arg0: i32) -> (i32, i32) {
    %c0_i32 = arith.constant 0 : i32
    %c0_i32_0 = arith.constant 0 : i32
    return %arg0, %c0_i32 : i32, i32
  }
  func.func @transform_1(%arg0: i32) -> (i32, i32) {
    %c0_i32 = arith.constant 0 : i32
    %c0_i32_0 = arith.constant 0 : i32
    %c0_i32_1 = arith.constant 0 : i32
    return %c0_i32, %c0_i32_0 : i32, i32
  }
  func.func @transform_2(%arg0: i32) -> (i32, i32) {
    %c0_i32 = arith.constant 0 : i32
    %c0_i32_0 = arith.constant 0 : i32
    %c0_i32_1 = arith.constant 0 : i32
    return %c0_i32, %c0_i32_0 : i32, i32
  }
  func.func @transform_3(%arg0: i32) -> (i32, i32) {
    %c0_i32 = arith.constant 0 : i32
    %c0_i32_0 = arith.constant 0 : i32
    return %arg0, %c0_i32 : i32, i32
  }
  func.func @transform_4(%arg0: i32) -> (i32, i32) {
    %c0_i32 = arith.constant 0 : i32
    %c0_i32_0 = arith.constant 0 : i32
    %c0_i32_1 = arith.constant 0 : i32
    return %c0_i32, %c0_i32_0 : i32, i32
  }
  func.func @transform_5(%arg0: i32) -> (i32, i32) {
    %c0_i32 = arith.constant 0 : i32
    %c0_i32_0 = arith.constant 0 : i32
    %c0_i32_1 = arith.constant 0 : i32
    return %c0_i32, %c0_i32_0 : i32, i32
  }
  func.func @transform_6(%arg0: i32) -> (i32, i32) {
    %c0_i32 = arith.constant 0 : i32
    %c0_i32_0 = arith.constant 0 : i32
    return %arg0, %c0_i32 : i32, i32
  }
}

module attributes {stable_mosaic.version = 11 : i64} {
  func.func @_linear_kernel(%arg0: i32, %arg1: memref<16x32xbf16, #tpu.memory_space<vmem>>, %arg2: memref<32x128xbf16, #tpu.memory_space<vmem>>, %arg3: memref<1x128xf32, #tpu.memory_space<vmem>>, %arg4: memref<16x128xf32, #tpu.memory_space<vmem>>) attributes {dimension_semantics = [#tpu.dimension_semantics<parallel>], iteration_bounds = array<i64: 1>, scalar_prefetch = 0 : i64, scratch_operands = 0 : i64, tpu.core_type = #tpu.core_type<tc>, window_params = [{transform_indices = @transform_0, window_bounds = array<i64: 16, 32>}, {pipeline_mode = #tpu.pipeline_mode<synchronous>, transform_indices = @transform_1, window_bounds = array<i64: 32, 128>}, {pipeline_mode = #tpu.pipeline_mode<synchronous>, transform_indices = @transform_2, window_bounds = array<i64: 1, 128>}, {transform_indices = @transform_3, window_bounds = array<i64: 16, 128>}]} {
    %c0 = arith.constant 0 : index
    %c0_0 = arith.constant 0 : index
    %0 = vector.load %arg1[%c0, %c0_0] : memref<16x32xbf16, #tpu.memory_space<vmem>>, vector<16x32xbf16>
    %c0_1 = arith.constant 0 : index
    %c0_2 = arith.constant 0 : index
    %1 = vector.load %arg2[%c0_1, %c0_2] : memref<32x128xbf16, #tpu.memory_space<vmem>>, vector<32x128xbf16>
    %cst = arith.constant dense<0.000000e+00> : vector<16x128xf32>
    %2 = tpu.matmul %0, %1, %cst {dimension_numbers = #tpu.dot_dimension_numbers<[1], [0], [0], [1], [0, 0, 1, 1], [], []>} : vector<16x32xbf16>, vector<32x128xbf16>, vector<16x128xf32> -> vector<16x128xf32>
    %c0_3 = arith.constant 0 : index
    %c0_4 = arith.constant 0 : index
    %3 = vector.load %arg3[%c0_3, %c0_4] : memref<1x128xf32, #tpu.memory_space<vmem>>, vector<1x128xf32>
    %4 = vector.broadcast %3 : vector<1x128xf32> to vector<16x128xf32>
    %5 = arith.addf %2, %4 : vector<16x128xf32>
    %c0_5 = arith.constant 0 : index
    %c0_6 = arith.constant 0 : index
    %6 = vector.load %arg4[%c0_5, %c0_6] : memref<16x128xf32, #tpu.memory_space<vmem>>, vector<16x128xf32>
    tpu.vector_store %arg4[%c0_5, %c0_6], %5 {strides = array<i32>} : memref<16x128xf32, #tpu.memory_space<vmem>>, vector<16x128xf32>,
    return
  }
  func.func @transform_0(%arg0: i32) -> (i32, i32) {
    %c0_i32 = arith.constant 0 : i32
    %c0_i32_0 = arith.constant 0 : i32
    return %arg0, %c0_i32 : i32, i32
  }
  func.func @transform_1(%arg0: i32) -> (i32, i32) {
    %c0_i32 = arith.constant 0 : i32
    %c0_i32_0 = arith.constant 0 : i32
    %c0_i32_1 = arith.constant 0 : i32
    return %c0_i32, %c0_i32_0 : i32, i32
  }
  func.func @transform_2(%arg0: i32) -> (i32, i32) {
    %c0_i32 = arith.constant 0 : i32
    %c0_i32_0 = arith.constant 0 : i32
    %c0_i32_1 = arith.constant 0 : i32
    return %c0_i32, %c0_i32_0 : i32, i32
  }
  func.func @transform_3(%arg0: i32) -> (i32, i32) {
    %c0_i32 = arith.constant 0 : i32
    %c0_i32_0 = arith.constant 0 : i32
    return %arg0, %c0_i32 : i32, i32
  }
}

</mosaic_0001>

<llo_original>
// kernel: bert_forward.14
$region0: #{bert_forward.14}
  #allocation0 [shape = 'u32[]', space=smem, size = 0x4, offset = 0x4, fixed_abs, tag = 'smem constant byte address 0x4 - core index']
  #allocation1 [shape = 'u32[144,128]{1,0:T(1,128)}', space=vmem, size = 0x12000, scoped, tag = 'internal scratch']
  %s0 = inlined_call_operand.vmem [shape: bf16[16,32], index: 0, kind: input, shape index: {}]
  %s1 = inlined_call_operand.vmem [shape: bf16[32,32], index: 1, kind: input, shape index: {}]
  %s2 = inlined_call_operand.vmem [shape: f32[1,32], index: 2, kind: input, shape index: {}]
  %s3 = inlined_call_operand.vmem [shape: bf16[16,32], index: 3, kind: output, shape index: {}]
  %s4 = sld [smem:[#allocation0]]
  $region22: #{bert_forward.14} parent=0
    _
  %s6 = ssub.s32 1, %s4
  %s7 = scalar_select 0, %s6, %s4
  // Predicated region
  $region2: #{bert_forward.14} parent=0 // pred_check
    _
  $region3: #{bert_forward.14} parent=0 // pred_check_branch
    %9 = sbr.rel (0) target = $region5
  $region4: #{bert_forward.14} parent=0 // pred_region
    _
  $region5: #{bert_forward.14} parent=0 // pred_fallthru
    _
  // Predicated region
  $region6: #{bert_forward.14} parent=0 // pred_check
    _
  $region7: #{bert_forward.14} parent=0 // pred_check_branch
    %11 = sbr.rel (0) target = $region9
  $region8: #{bert_forward.14} parent=0 // pred_region
    _
  $region9: #{bert_forward.14} parent=0 // pred_fallthru
    _
  // Predicated region
  $region10: #{bert_forward.14} parent=0 // pred_check
    _
  $region11: #{bert_forward.14} parent=0 // pred_check_branch
    %13 = sbr.rel (0) target = $region13
  $region12: #{bert_forward.14} parent=0 // pred_region
    _
  $region13: #{bert_forward.14} parent=0 // pred_fallthru
    _
  %v15 = vld [vmem:[%s0] sm:$0xf]
  %v16 = vld [vmem:[%s0 + $0x4] sm:$0xf]
  %v17 = vld [vmem:[%s1] sm:$0xf]
  %v18 = vld [vmem:[%s1 + $0x4] sm:$0xf]
  %v19 = vld [vmem:[%s1 + $0x8] sm:$0xf]
  %v20 = vld [vmem:[%s1 + $0xc] sm:$0xf]
  %v21 = vld [vmem:[%s2] sm:$0x1]
  %v23 = vlaneseq
  %v24 = vshrl.u32 %v23, 7
  %v25 = vsub.s32 0, %v24
  %v26 = vrot.slane %v21, %v25
  %v30 = vunpack.c.l.b16 %v15
  %v31 = vunpack.c.l.b16 %v16
  %v32 = vpack.c.b16 %v31, %v30
  %v37 = vunpack.c.l.b16 %v17
  %v38 = vunpack.c.l.b16 %v18
  %v39 = vunpack.c.l.b16 %v19
  %v40 = vunpack.c.l.b16 %v20
  %v41 = vpack.c.b16 %v38, %v37
  %v42 = vpack.c.b16 %v40, %v39
  %vm45 = vcmask 261120
  %v47 = vsel %vm45, %v32, 0
  %49 = vmatprep.subr.bf16.mxu0 0
  %50 = vmatpush1.bf16.msra.mxu0 %v41
  %51 = vmatprep.subr.bf16.mxu0 0
  %52 = vmatpush1.bf16.msra.mxu0 %v42
  %53 = vmatprep.subr.bf16.mxu0 0
  %54 = vmatpush1.bf16.msra.mxu0 0
  %55 = vmatprep.subr.bf16.mxu0 0
  %56 = vmatpush1.bf16.msra.mxu0 0
  %57 = vmatprep.subr.bf16.mxu0 0
  %58 = vmatpush1.bf16.msra.mxu0 0
  %59 = vmatprep.subr.bf16.mxu0 0
  %60 = vmatpush1.bf16.msra.mxu0 0
  %61 = vmatprep.subr.bf16.mxu0 0
  %62 = vmatpush1.bf16.msra.mxu0 0
  %63 = vmatprep.subr.bf16.mxu0 0
  %64 = vmatpush1.bf16.msra.mxu0 0
  %65 = vmatprep.subr.bf16.mxu0 0
  %66 = vmatpush1.bf16.msra.mxu0 0
  %67 = vmatprep.subr.bf16.mxu0 0
  %68 = vmatpush1.bf16.msra.mxu0 0
  %69 = vmatprep.subr.bf16.mxu0 0
  %70 = vmatpush1.bf16.msra.mxu0 0
  %71 = vmatprep.subr.bf16.mxu0 0
  %72 = vmatpush1.bf16.msra.mxu0 0
  %73 = vmatprep.subr.bf16.mxu0 0
  %74 = vmatpush1.bf16.msra.mxu0 0
  %75 = vmatprep.subr.bf16.mxu0 0
  %76 = vmatpush1.bf16.msra.mxu0 0
  %77 = vmatprep.subr.bf16.mxu0 0
  %78 = vmatpush1.bf16.msra.mxu0 0
  %79 = vmatprep.subr.bf16.mxu0 0
  %80 = vmatpush1.bf16.msra.mxu0 0
  %81 = vmatprep.mubr.bf16.mxu0 0
  %82 = vmatmul.mubr.bf16.gmra.mrb[0].mxu0 %v47
  %v83 = vpop.f32.mrb[0].mxu0
  %v84 = vadd.f32 %v26, %v83
  %v85 = vpop.f32.mrb[0].mxu0
  %v86 = vpop.f32.mrb[0].mxu0
  %v87 = vadd.f32 %v26, %v86
  %v88 = vpop.f32.mrb[0].mxu0
  %89 = vdwg.mxu0
  %v90 = vmax.f32 %v84, 0.0
  %v91 = vmax.f32 %v87, 0.0
  %v92 = vpack.c.bf16 %v91, %v90
  %v94 = vunpack.c.l.b16 %v92
  %v95 = vunpack.c.h.b16 %v92
  %v96 = vpack.c.b16 %v94, %v94
  %v97 = vpack.c.b16 %v95, %v95
  %vm100 = vcmask 257024
  %101 = vst.msk [vmem:[%s3] sm:$0xf] %vm100, %v96
  %102 = vst.msk [vmem:[%s3 + $0x4] sm:$0xf] %vm100, %v97
  // Predicated region
  $region14: #{bert_forward.14} parent=0 // pred_check
    _
  $region15: #{bert_forward.14} parent=0 // pred_check_branch
    %104 = sbr.rel (0) target = $region17
  $region16: #{bert_forward.14} parent=0 // pred_region
    _
  $region17: #{bert_forward.14} parent=0 // pred_fallthru
    _
  // Predicated region
  $region18: #{bert_forward.14} parent=0 // pred_check
    _
  $region19: #{bert_forward.14} parent=0 // pred_check_branch
    %106 = sbr.rel (0) target = $region21
  $region20: #{bert_forward.14} parent=0 // pred_region
    _
  $region21: #{bert_forward.14} parent=0 // pred_fallthru
    _

// kernel: bert_forward.11
$region0: #{bert_forward.11}
  #allocation0 [shape = 'u32[]', space=smem, size = 0x4, offset = 0x4, fixed_abs, tag = 'smem constant byte address 0x4 - core index']
  #allocation1 [shape = 'u32[144,128]{1,0:T(1,128)}', space=vmem, size = 0x12000, scoped, tag = 'internal scratch']
  %s0 = inlined_call_operand.vmem [shape: bf16[16,32], index: 0, kind: input, shape index: {}]
  %s1 = inlined_call_operand.vmem [shape: bf16[32,96], index: 1, kind: input, shape index: {}]
  %s2 = inlined_call_operand.vmem [shape: f32[1,96], index: 2, kind: input, shape index: {}]
  %s3 = inlined_call_operand.vmem [shape: bf16[16,96], index: 3, kind: output, shape index: {}]
  %s4 = sld [smem:[#allocation0]]
  $region22: #{bert_forward.11} parent=0
    _
  %s6 = ssub.s32 1, %s4
  %s7 = scalar_select 0, %s6, %s4
  // Predicated region
  $region2: #{bert_forward.11} parent=0 // pred_check
    _
  $region3: #{bert_forward.11} parent=0 // pred_check_branch
    %9 = sbr.rel (0) target = $region5
  $region4: #{bert_forward.11} parent=0 // pred_region
    _
  $region5: #{bert_forward.11} parent=0 // pred_fallthru
    _
  // Predicated region
  $region6: #{bert_forward.11} parent=0 // pred_check
    _
  $region7: #{bert_forward.11} parent=0 // pred_check_branch
    %11 = sbr.rel (0) target = $region9
  $region8: #{bert_forward.11} parent=0 // pred_region
    _
  $region9: #{bert_forward.11} parent=0 // pred_fallthru
    _
  // Predicated region
  $region10: #{bert_forward.11} parent=0 // pred_check
    _
  $region11: #{bert_forward.11} parent=0 // pred_check_branch
    %13 = sbr.rel (0) target = $region13
  $region12: #{bert_forward.11} parent=0 // pred_region
    _
  $region13: #{bert_forward.11} parent=0 // pred_fallthru
    _
  %v15 = vld [vmem:[%s0] sm:$0xf]
  %v16 = vld [vmem:[%s0 + $0x4] sm:$0xf]
  %v17 = vld [vmem:[%s1] sm:$0xf]
  %v18 = vld [vmem:[%s1 + $0x4] sm:$0xf]
  %v19 = vld [vmem:[%s1 + $0x8] sm:$0xf]
  %v20 = vld [vmem:[%s1 + $0xc] sm:$0xf]
  %v21 = vld [vmem:[%s2] sm:$0x1]
  %v23 = vlaneseq
  %v24 = vshrl.u32 %v23, 7
  %v25 = vsub.s32 0, %v24
  %v26 = vrot.slane %v21, %v25
  %v30 = vunpack.c.l.b16 %v15
  %v31 = vunpack.c.l.b16 %v16
  %v32 = vpack.c.b16 %v31, %v30
  %v37 = vunpack.c.l.b16 %v17
  %v38 = vunpack.c.l.b16 %v18
  %v39 = vunpack.c.l.b16 %v19
  %v40 = vunpack.c.l.b16 %v20
  %v41 = vpack.c.b16 %v38, %v37
  %v42 = vpack.c.b16 %v40, %v39
  %vm45 = vcmask 261120
  %v47 = vsel %vm45, %v32, 0
  %49 = vmatprep.subr.bf16.mxu0 0
  %50 = vmatpush1.bf16.msra.mxu0 %v41
  %51 = vmatprep.subr.bf16.mxu0 0
  %52 = vmatpush1.bf16.msra.mxu0 %v42
  %53 = vmatprep.subr.bf16.mxu0 0
  %54 = vmatpush1.bf16.msra.mxu0 0
  %55 = vmatprep.subr.bf16.mxu0 0
  %56 = vmatpush1.bf16.msra.mxu0 0
  %57 = vmatprep.subr.bf16.mxu0 0
  %58 = vmatpush1.bf16.msra.mxu0 0
  %59 = vmatprep.subr.bf16.mxu0 0
  %60 = vmatpush1.bf16.msra.mxu0 0
  %61 = vmatprep.subr.bf16.mxu0 0
  %62 = vmatpush1.bf16.msra.mxu0 0
  %63 = vmatprep.subr.bf16.mxu0 0
  %64 = vmatpush1.bf16.msra.mxu0 0
  %65 = vmatprep.subr.bf16.mxu0 0
  %66 = vmatpush1.bf16.msra.mxu0 0
  %67 = vmatprep.subr.bf16.mxu0 0
  %68 = vmatpush1.bf16.msra.mxu0 0
  %69 = vmatprep.subr.bf16.mxu0 0
  %70 = vmatpush1.bf16.msra.mxu0 0
  %71 = vmatprep.subr.bf16.mxu0 0
  %72 = vmatpush1.bf16.msra.mxu0 0
  %73 = vmatprep.subr.bf16.mxu0 0
  %74 = vmatpush1.bf16.msra.mxu0 0
  %75 = vmatprep.subr.bf16.mxu0 0
  %76 = vmatpush1.bf16.msra.mxu0 0
  %77 = vmatprep.subr.bf16.mxu0 0
  %78 = vmatpush1.bf16.msra.mxu0 0
  %79 = vmatprep.subr.bf16.mxu0 0
  %80 = vmatpush1.bf16.msra.mxu0 0
  %81 = vmatprep.mubr.bf16.mxu0 0
  %82 = vmatmul.mubr.bf16.gmra.mrb[0].mxu0 %v47
  %v83 = vpop.f32.mrb[0].mxu0
  %v84 = vadd.f32 %v26, %v83
  %v85 = vpop.f32.mrb[0].mxu0
  %v86 = vpop.f32.mrb[0].mxu0
  %v87 = vadd.f32 %v26, %v86
  %v88 = vpop.f32.mrb[0].mxu0
  %89 = vdwg.mxu0
  %v90 = vpack.c.bf16 %v87, %v84
  %v92 = vunpack.c.l.b16 %v90
  %v93 = vunpack.c.h.b16 %v90
  %v94 = vpack.c.b16 %v92, %v92
  %v95 = vpack.c.b16 %v93, %v93
  %vm98 = vcmask 781312
  %99 = vst.msk [vmem:[%s3] sm:$0xf] %vm98, %v94
  %100 = vst.msk [vmem:[%s3 + $0x4] sm:$0xf] %vm98, %v95
  // Predicated region
  $region14: #{bert_forward.11} parent=0 // pred_check
    _
  $region15: #{bert_forward.11} parent=0 // pred_check_branch
    %102 = sbr.rel (0) target = $region17
  $region16: #{bert_forward.11} parent=0 // pred_region
    _
  $region17: #{bert_forward.11} parent=0 // pred_fallthru
    _
  // Predicated region
  $region18: #{bert_forward.11} parent=0 // pred_check
    _
  $region19: #{bert_forward.11} parent=0 // pred_check_branch
    %104 = sbr.rel (0) target = $region21
  $region20: #{bert_forward.11} parent=0 // pred_region
    _
  $region21: #{bert_forward.11} parent=0 // pred_fallthru
    _

// kernel: bert_forward.13
$region0: #{bert_forward.13}
  #allocation0 [shape = 'u32[]', space=smem, size = 0x4, offset = 0x4, fixed_abs, tag = 'smem constant byte address 0x4 - core index']
  #allocation1 [shape = 'u32[144,128]{1,0:T(1,128)}', space=vmem, size = 0x12000, scoped, tag = 'internal scratch']
  %s0 = inlined_call_operand.vmem [shape: bf16[16,32], index: 0, kind: input, shape index: {}]
  %s1 = inlined_call_operand.vmem [shape: bf16[32,32], index: 1, kind: input, shape index: {}]
  %s2 = inlined_call_operand.vmem [shape: f32[1,32], index: 2, kind: input, shape index: {}]
  %s3 = inlined_call_operand.vmem [shape: bf16[16,32], index: 3, kind: input, shape index: {}]
  %s4 = inlined_call_operand.vmem [shape: f32[1,32], index: 4, kind: input, shape index: {}]
  %s5 = inlined_call_operand.vmem [shape: f32[1,32], index: 5, kind: input, shape index: {}]
  %s6 = inlined_call_operand.vmem [shape: bf16[16,32], index: 6, kind: output, shape index: {}]
  %s7 = sld [smem:[#allocation0]]
  $region34: #{bert_forward.13} parent=0
    _
  %s9 = ssub.s32 1, %s7
  %s10 = scalar_select 0, %s9, %s7
  // Predicated region
  $region2: #{bert_forward.13} parent=0 // pred_check
    _
  $region3: #{bert_forward.13} parent=0 // pred_check_branch
    %12 = sbr.rel (0) target = $region5
  $region4: #{bert_forward.13} parent=0 // pred_region
    _
  $region5: #{bert_forward.13} parent=0 // pred_fallthru
    _
  // Predicated region
  $region6: #{bert_forward.13} parent=0 // pred_check
    _
  $region7: #{bert_forward.13} parent=0 // pred_check_branch
    %14 = sbr.rel (0) target = $region9
  $region8: #{bert_forward.13} parent=0 // pred_region
    _
  $region9: #{bert_forward.13} parent=0 // pred_fallthru
    _
  // Predicated region
  $region10: #{bert_forward.13} parent=0 // pred_check
    _
  $region11: #{bert_forward.13} parent=0 // pred_check_branch
    %16 = sbr.rel (0) target = $region13
  $region12: #{bert_forward.13} parent=0 // pred_region
    _
  $region13: #{bert_forward.13} parent=0 // pred_fallthru
    _
  // Predicated region
  $region14: #{bert_forward.13} parent=0 // pred_check
    _
  $region15: #{bert_forward.13} parent=0 // pred_check_branch
    %18 = sbr.rel (0) target = $region17
  $region16: #{bert_forward.13} parent=0 // pred_region
    _
  $region17: #{bert_forward.13} parent=0 // pred_fallthru
    _
  // Predicated region
  $region18: #{bert_forward.13} parent=0 // pred_check
    _
  $region19: #{bert_forward.13} parent=0 // pred_check_branch
    %20 = sbr.rel (0) target = $region21
  $region20: #{bert_forward.13} parent=0 // pred_region
    _
  $region21: #{bert_forward.13} parent=0 // pred_fallthru
    _
  // Predicated region
  $region22: #{bert_forward.13} parent=0 // pred_check
    _
  $region23: #{bert_forward.13} parent=0 // pred_check_branch
    %22 = sbr.rel (0) target = $region25
  $region24: #{bert_forward.13} parent=0 // pred_region
    _
  $region25: #{bert_forward.13} parent=0 // pred_fallthru
    _
  %v24 = vld [vmem:[%s0] sm:$0xf]
  %v25 = vld [vmem:[%s0 + $0x4] sm:$0xf]
  %v26 = vld [vmem:[%s1] sm:$0xf]
  %v27 = vld [vmem:[%s1 + $0x4] sm:$0xf]
  %v28 = vld [vmem:[%s1 + $0x8] sm:$0xf]
  %v29 = vld [vmem:[%s1 + $0xc] sm:$0xf]
  %v30 = vld [vmem:[%s2] sm:$0x1]
  %v32 = vlaneseq
  %v33 = vshrl.u32 %v32, 7
  %v34 = vsub.s32 0, %v33
  %v35 = vrot.slane %v30, %v34
  %v39 = vunpack.c.l.b16 %v24
  %v40 = vunpack.c.l.b16 %v25
  %v41 = vpack.c.b16 %v40, %v39
  %v46 = vunpack.c.l.b16 %v26
  %v47 = vunpack.c.l.b16 %v27
  %v48 = vunpack.c.l.b16 %v28
  %v49 = vunpack.c.l.b16 %v29
  %v50 = vpack.c.b16 %v47, %v46
  %v51 = vpack.c.b16 %v49, %v48
  %vm54 = vcmask 261120
  %v56 = vsel %vm54, %v41, 0
  %58 = vmatprep.subr.bf16.mxu0 0
  %59 = vmatpush1.bf16.msra.mxu0 %v50
  %60 = vmatprep.subr.bf16.mxu0 0
  %61 = vmatpush1.bf16.msra.mxu0 %v51
  %62 = vmatprep.subr.bf16.mxu0 0
  %63 = vmatpush1.bf16.msra.mxu0 0
  %64 = vmatprep.subr.bf16.mxu0 0
  %65 = vmatpush1.bf16.msra.mxu0 0
  %66 = vmatprep.subr.bf16.mxu0 0
  %67 = vmatpush1.bf16.msra.mxu0 0
  %68 = vmatprep.subr.bf16.mxu0 0
  %69 = vmatpush1.bf16.msra.mxu0 0
  %70 = vmatprep.subr.bf16.mxu0 0
  %71 = vmatpush1.bf16.msra.mxu0 0
  %72 = vmatprep.subr.bf16.mxu0 0
  %73 = vmatpush1.bf16.msra.mxu0 0
  %74 = vmatprep.subr.bf16.mxu0 0
  %75 = vmatpush1.bf16.msra.mxu0 0
  %76 = vmatprep.subr.bf16.mxu0 0
  %77 = vmatpush1.bf16.msra.mxu0 0
  %78 = vmatprep.subr.bf16.mxu0 0
  %79 = vmatpush1.bf16.msra.mxu0 0
  %80 = vmatprep.subr.bf16.mxu0 0
  %81 = vmatpush1.bf16.msra.mxu0 0
  %82 = vmatprep.subr.bf16.mxu0 0
  %83 = vmatpush1.bf16.msra.mxu0 0
  %84 = vmatprep.subr.bf16.mxu0 0
  %85 = vmatpush1.bf16.msra.mxu0 0
  %86 = vmatprep.subr.bf16.mxu0 0
  %87 = vmatpush1.bf16.msra.mxu0 0
  %88 = vmatprep.subr.bf16.mxu0 0
  %89 = vmatpush1.bf16.msra.mxu0 0
  %90 = vmatprep.mubr.bf16.mxu0 0
  %91 = vmatmul.mubr.bf16.gmra.mrb[0].mxu0 %v56
  %v92 = vpop.f32.mrb[0].mxu0
  %v93 = vadd.f32 %v35, %v92
  %v94 = vpop.f32.mrb[0].mxu0
  %v95 = vpop.f32.mrb[0].mxu0
  %v96 = vadd.f32 %v35, %v95
  %v97 = vpop.f32.mrb[0].mxu0
  %98 = vdwg.mxu0
  %v99 = vld [vmem:[%s3] sm:$0xf]
  %v100 = vld [vmem:[%s3 + $0x4] sm:$0xf]
  %v101 = vunpack.c.l.bf16 %v99
  %v102 = vunpack.c.l.bf16 %v100
  %v103 = vadd.f32 %v93, %v101
  %v104 = vadd.f32 %v96, %v102
  %v105 = vsel %vm54, %v103, 0.0
  %106 = vadd.xlane.f32.xlu0 %v105
  %v107 = vpop.xlane.xlu0 %106
  %v108 = vsel %vm54, %v104, 0.0
  %109 = vadd.xlane.f32.xlu0 %v108
  %v110 = vpop.xlane.xlu0 %109
  %v111 = vrcp.pop 32.0
  %v112 = vmul.f32 %v107, %v111
  %v113 = vmul.f32 %v110, %v111
  %v114 = vsub.f32 %v103, %v112
  %v115 = vsub.f32 %v104, %v113
  %v116 = vmul.f32 %v114, %v114
  %v117 = vmul.f32 %v115, %v115
  %v118 = vsel %vm54, %v116, 0.0
  %119 = vadd.xlane.f32.xlu0 %v118
  %v120 = vpop.xlane.xlu0 %119
  %v121 = vsel %vm54, %v117, 0.0
  %122 = vadd.xlane.f32.xlu0 %v121
  %v123 = vpop.xlane.xlu0 %122
  %v124 = vmul.f32 %v120, %v111
  %v125 = vmul.f32 %v123, %v111
  %v126 = vadd.f32 %v124, 1e-05
  %v127 = vadd.f32 %v125, 1e-05
  %v128 = vrsqrt.pop %v126
  %v129 = vrsqrt.pop %v127
  %v130 = vmul.f32 %v114, %v128
  %v131 = vmul.f32 %v115, %v129
  %v132 = vld [vmem:[%s4] sm:$0x1]
  %v134 = vlaneseq
  %v135 = vshrl.u32 %v134, 7
  %v136 = vsub.s32 0, %v135
  %v137 = vrot.slane %v132, %v136
  %v139 = vmul.f32 %v130, %v137
  %v140 = vmul.f32 %v131, %v137
  %v141 = vld [vmem:[%s5] sm:$0x1]
  %v143 = vlaneseq
  %v144 = vshrl.u32 %v143, 7
  %v145 = vsub.s32 0, %v144
  %v146 = vrot.slane %v141, %v145
  %v148 = vadd.f32 %v139, %v146
  %v149 = vadd.f32 %v140, %v146
  %v150 = vpack.c.bf16 %v149, %v148
  %v152 = vunpack.c.l.b16 %v150
  %v153 = vunpack.c.h.b16 %v150
  %v154 = vpack.c.b16 %v152, %v152
  %v155 = vpack.c.b16 %v153, %v153
  %vm158 = vcmask 257024
  %159 = vst.msk [vmem:[%s6] sm:$0xf] %vm158, %v154
  %160 = vst.msk [vmem:[%s6 + $0x4] sm:$0xf] %vm158, %v155
  // Predicated region
  $region26: #{bert_forward.13} parent=0 // pred_check
    _
  $region27: #{bert_forward.13} parent=0 // pred_check_branch
    %162 = sbr.rel (0) target = $region29
  $region28: #{bert_forward.13} parent=0 // pred_region
    _
  $region29: #{bert_forward.13} parent=0 // pred_fallthru
    _
  // Predicated region
  $region30: #{bert_forward.13} parent=0 // pred_check
    _
  $region31: #{bert_forward.13} parent=0 // pred_check_branch
    %164 = sbr.rel (0) target = $region33
  $region32: #{bert_forward.13} parent=0 // pred_region
    _
  $region33: #{bert_forward.13} parent=0 // pred_fallthru
    _

// kernel: bert_forward.12
$region0: #{bert_forward.12}
  #allocation0 [shape = 'u32[]', space=smem, size = 0x4, offset = 0x4, fixed_abs, tag = 'smem constant byte address 0x4 - core index']
  #allocation1 [shape = 'u32[144,128]{1,0:T(1,128)}', space=vmem, size = 0x12000, scoped, tag = 'internal scratch']
  %s0 = inlined_call_operand.vmem [shape: bf16[2,8,96], index: 0, kind: input, shape index: {}]
  %s1 = inlined_call_operand.vmem [shape: bf16[2,8,32], index: 1, kind: output, shape index: {}]
  %s2 = sld [smem:[#allocation0]]
  $region37: #{bert_forward.12} parent=0
    _
  %s4 = ssub.s32 1, %s2
  %s5 = scalar_select 0, %s4, %s2
  loop: start=0, step=1, limit=4
  $region2: #{bert_forward.12} parent=0 // loop_pre_header
    _
  $region3: #{bert_forward.12} parent=0 // loop_header
    %s7 = sphi 0, %s11
    %p8 = scmp.ge.s32.totalorder %s7, 4
    %s14 = sphi 0, %s26
    %s15 = sphi 0, %s22
    %s16 = sphi 0, %s14
    %s17 = sphi 0, %s15
    %s18 = sphi 0, %s16
    %s19 = sphi 0, %s17
    %s29 = sphi 0, %s31
    %s32 = sphi 0, %s29
    %s33 = sphi 0, %s32
    %s49 = sphi 0, %s33
    %s57 = sphi 0, %s59
    %s60 = sphi 0, %s57
    %s61 = sphi 0, %s60
    %s77 = sphi 0, %s61
  $region4: #{bert_forward.12} parent=0 // loop_header_branch
    %10 = sbr.rel (%p8) target = $region8
  $region5: #{bert_forward.12} parent=0 // loop_body
    %s12 = ssub.s32 %s7, 1
    %s13 = ssub.s32 %s7, 2
    %s20 = sadd.s32 1, %s15
    %p21 = scmp.ge.s32.totalorder %s20, 1
    %s22 = scalar_select %p21, 0, %s20
    %s23 = sadd.s32 1, %s14
    %s24 = scalar_select %p21, %s23, %s14
    %p25 = scmp.ge.s32.totalorder %s24, 2
    %s26 = scalar_select %p25, 0, %s24
    %s27 = ssub.s32 %s14, %s26
    %p28 = scmp.eq.s32.totalorder %s27, 0
    %s30 = sadd.s32 %s29, 1
    %s31 = scalar_select %p28, %s29, %s30
    %p34 = pneg %p28
    %p35 = scmp.eq.s32.totalorder %s7, 1
    %p36 = por %p34, %p35
    %p37 = scmp.ne.s32.totalorder %s29, %s32
    %p38 = scmp.eq.s32.totalorder %s7, 0
    %p39 = por %p37, %p38
    %p40 = scmp.ne.s32.totalorder %s29, %s32
    %p41 = scmp.eq.s32.totalorder %s12, 1
    %p42 = por %p40, %p41
    %p43 = scmp.ne.s32.totalorder %s32, %s33
    %p44 = scmp.eq.s32.totalorder %s12, 0
    %p45 = por %p43, %p44
    %p46 = scmp.ne.s32.totalorder %s32, %s33
    %p47 = scmp.eq.s32.totalorder %s13, 1
    %p48 = por %p46, %p47
    %p50 = scmp.ne.s32.totalorder %s33, %s49
    %p51 = scmp.eq.s32.totalorder %s13, 0
    %p52 = por %p50, %p51
    %s53 = ssub.s32 %s14, %s26
    %s54 = ssub.s32 %s15, %s22
    %s55 = sor.u32 %s53, %s54
    %p56 = scmp.eq.s32.totalorder %s55, 0
    %s58 = sadd.s32 %s57, 1
    %s59 = scalar_select %p56, %s57, %s58
    %p62 = pneg %p56
    %p63 = scmp.eq.s32.totalorder %s7, 1
    %p64 = por %p62, %p63
    %p65 = scmp.ne.s32.totalorder %s57, %s60
    %p66 = scmp.eq.s32.totalorder %s7, 0
    %p67 = por %p65, %p66
    %p68 = scmp.ne.s32.totalorder %s57, %s60
    %p69 = scmp.eq.s32.totalorder %s12, 1
    %p70 = por %p68, %p69
    %p71 = scmp.ne.s32.totalorder %s60, %s61
    %p72 = scmp.eq.s32.totalorder %s12, 0
    %p73 = por %p71, %p72
    %p74 = scmp.ne.s32.totalorder %s60, %s61
    %p75 = scmp.eq.s32.totalorder %s13, 1
    %p76 = por %p74, %p75
    %p78 = scmp.ne.s32.totalorder %s61, %s77
    %p79 = scmp.eq.s32.totalorder %s13, 0
    %p80 = por %p78, %p79
    %p81 = scmp.le.s32.totalorder 1, %s7
    %p82 = scmp.lt.s32.totalorder %s7, 3
    %p83 = pnand %p81, %p82
    %p84 = pneg %p83
    // Predicated region
    $region9: #{bert_forward.12} parent=5 // pred_check
      _
    $region10: #{bert_forward.12} parent=5 // pred_check_branch
      %86 = sbr.rel (%p83) target = $region12
    $region11: #{bert_forward.12} parent=5 // pred_region
      %s87 = ssub.s32 %s7, 1
    $region12: #{bert_forward.12} parent=5 // pred_fallthru
      _
    %p88 = scmp.lt.s32.totalorder %s7, 2
    // Predicated region
    $region13: #{bert_forward.12} parent=5 // pred_check
      %p89 = pneg %p88
    $region14: #{bert_forward.12} parent=5 // pred_check_branch
      %91 = sbr.rel (%p89) target = $region16
    $region15: #{bert_forward.12} parent=5 // pred_region
      // Predicated region
      $region17: #{bert_forward.12} parent=15 // pred_check
        %p92 = pneg %p39
      $region18: #{bert_forward.12} parent=15 // pred_check_branch
        %94 = sbr.rel (%p92) target = $region20
      $region19: #{bert_forward.12} parent=15 // pred_region
        %p95 = scmp.lt.s32.totalorder %s14, 1
        %s96 = scalar_select %p95, %s14, 1
        %s97 = smul.addr %s96, 4
        %s98 = scalar_lea.vmem %s0, %s97
      $region20: #{bert_forward.12} parent=15 // pred_fallthru
        _
    $region16: #{bert_forward.12} parent=5 // pred_fallthru
      _
    %p99 = scmp.le.s32.totalorder 1, %s7
    %p100 = scmp.lt.s32.totalorder %s7, 3
    %p101 = pnand %p99, %p100
    %p102 = pneg %p101
    // Predicated region
    $region21: #{bert_forward.12} parent=5 // pred_check
      _
    $region22: #{bert_forward.12} parent=5 // pred_check_branch
      %104 = sbr.rel (%p101) target = $region24
    $region23: #{bert_forward.12} parent=5 // pred_region
      %s105 = ssub.s32 %s7, 1
      %p106 = scmp.lt.s32.totalorder %s16, 1
      %s107 = scalar_select %p106, %s16, 1
      %s108 = smul.addr %s107, 4
      %s109 = scalar_lea.vmem %s0, %s108
      %p110 = pneg %p45
      %p111 = pneg %p42
      %p112 = pneg %p73
      %p113 = pneg %p70
      %p114 = scmp.lt.s32.totalorder %s16, 1
      %s115 = scalar_select %p114, %s16, 1
      %p116 = scmp.lt.s32.totalorder %s17, 0
      %s117 = scalar_select %p116, %s17, 0
      %s118 = sadd.s32 %s117, %s115
      %s119 = smul.addr %s118, 4
      %s120 = scalar_lea.vmem %s1, %s119
      %p121 = scmp.lt.s32.totalorder %s16, 1
      %s122 = scalar_select %p121, %s16, 1
      %s123 = smul.addr %s122, 4
      %s124 = scalar_lea.vmem %s0, %s123
      %p125 = scmp.lt.s32.totalorder %s16, 1
      %s126 = scalar_select %p125, %s16, 1
      %p127 = scmp.lt.s32.totalorder %s17, 0
      %s128 = scalar_select %p127, %s17, 0
      %s129 = sadd.s32 %s128, %s126
      %s130 = smul.addr %s129, 4
      %s131 = scalar_lea.vmem %s1, %s130
      %v133 = vld [vmem:[%s124] sm:$0xf]
      %v135 = vunpack.c.l.b16 %v133
      %v136 = vpack.c.b16 %v135, %v135
      %137 = vrot.lane.b32.xlu0 %v136, 96
      %v138 = vpop.permute.xlu0 %137
      %vm139 = vcmask 64512
      %v141 = vsel %vm139, %v133, 0
      %v144 = vsel %vm139, %v138, 0
      %146 = vmatprep.subr.bf16.mxu0 0
      %147 = vmatpush1.bf16.xpose.msra.mxu0 %v144
      %148 = vmatprep.subr.bf16.mxu0 0
      %149 = vmatpush1.bf16.xpose.msra.mxu0 0
      %150 = vmatprep.subr.bf16.mxu0 0
      %151 = vmatpush1.bf16.xpose.msra.mxu0 0
      %152 = vmatprep.subr.bf16.mxu0 0
      %153 = vmatpush1.bf16.xpose.msra.mxu0 0
      %154 = vmatprep.subr.bf16.mxu0 0
      %155 = vmatpush1.bf16.xpose.msra.mxu0 0
      %156 = vmatprep.subr.bf16.mxu0 0
      %157 = vmatpush1.bf16.xpose.msra.mxu0 0
      %158 = vmatprep.subr.bf16.mxu0 0
      %159 = vmatpush1.bf16.xpose.msra.mxu0 0
      %160 = vmatprep.subr.bf16.mxu0 0
      %161 = vmatpush1.bf16.xpose.msra.mxu0 0
      %162 = vmatprep.subr.bf16.mxu0 0
      %163 = vmatpush1.bf16.xpose.msra.mxu0 0
      %164 = vmatprep.subr.bf16.mxu0 0
      %165 = vmatpush1.bf16.xpose.msra.mxu0 0
      %166 = vmatprep.subr.bf16.mxu0 0
      %167 = vmatpush1.bf16.xpose.msra.mxu0 0
      %168 = vmatprep.subr.bf16.mxu0 0
      %169 = vmatpush1.bf16.xpose.msra.mxu0 0
      %170 = vmatprep.subr.bf16.mxu0 0
      %171 = vmatpush1.bf16.xpose.msra.mxu0 0
      %172 = vmatprep.subr.bf16.mxu0 0
      %173 = vmatpush1.bf16.xpose.msra.mxu0 0
      %174 = vmatprep.subr.bf16.mxu0 0
      %175 = vmatpush1.bf16.xpose.msra.mxu0 0
      %176 = vmatprep.subr.bf16.mxu0 0
      %177 = vmatpush1.bf16.xpose.msra.mxu0 0
      %178 = vmatprep.mubr.bf16.mxu0 0
      %179 = vmatmul.mubr.bf16.gmra.mrb[0].mxu0 %v141
      %v180 = vpop.f32.mrb[0].mxu0
      %v181 = vadd.f32 0.0, %v180
      %v182 = vpop.f32.mrb[0].mxu0
      %v183 = vpop.f32.mrb[0].mxu0
      %v184 = vpop.f32.mrb[0].mxu0
      %185 = vdwg.mxu0
      %v186 = vmul.f32 %v181, 0.35355338
      %v187 = vsel %vm139, %v186, -inf
      %188 = vmax.xlane.f32.xlu0 %v187
      %v189 = vpop.xlane.xlu0 %188
      %v190 = vsub.f32 %v186, %v189
      %v191 = vmul.f32 %v190, 1.442695
      %v192 = vpow.pop %v191
      %v193 = vsel %vm139, %v192, 0.0
      %194 = vadd.xlane.f32.xlu0 %v193
      %v195 = vpop.xlane.xlu0 %194
      %v196 = vrcp.pop %v195
      %v197 = vmul.f32 %v192, %v196
      %v198 = vpack.c.bf16 %v197, %v197
      %199 = vrot.lane.b32.xlu0 %v136, 64
      %v200 = vpop.permute.xlu0 %199
      %v202 = vsel %vm139, %v198, 0
      %vm204 = vcmask 1043456
      %v206 = vsel %vm204, %v200, 0
      %208 = vmatprep.subr.bf16.mxu0 0
      %209 = vmatpush1.bf16.msra.mxu0 %v206
      %210 = vmatprep.subr.bf16.mxu0 0
      %211 = vmatpush1.bf16.msra.mxu0 0
      %212 = vmatprep.subr.bf16.mxu0 0
      %213 = vmatpush1.bf16.msra.mxu0 0
      %214 = vmatprep.subr.bf16.mxu0 0
      %215 = vmatpush1.bf16.msra.mxu0 0
      %216 = vmatprep.subr.bf16.mxu0 0
      %217 = vmatpush1.bf16.msra.mxu0 0
      %218 = vmatprep.subr.bf16.mxu0 0
      %219 = vmatpush1.bf16.msra.mxu0 0
      %220 = vmatprep.subr.bf16.mxu0 0
      %221 = vmatpush1.bf16.msra.mxu0 0
      %222 = vmatprep.subr.bf16.mxu0 0
      %223 = vmatpush1.bf16.msra.mxu0 0
      %224 = vmatprep.subr.bf16.mxu0 0
      %225 = vmatpush1.bf16.msra.mxu0 0
      %226 = vmatprep.subr.bf16.mxu0 0
      %227 = vmatpush1.bf16.msra.mxu0 0
      %228 = vmatprep.subr.bf16.mxu0 0
      %229 = vmatpush1.bf16.msra.mxu0 0
      %230 = vmatprep.subr.bf16.mxu0 0
      %231 = vmatpush1.bf16.msra.mxu0 0
      %232 = vmatprep.subr.bf16.mxu0 0
      %233 = vmatpush1.bf16.msra.mxu0 0
      %234 = vmatprep.subr.bf16.mxu0 0
      %235 = vmatpush1.bf16.msra.mxu0 0
      %236 = vmatprep.subr.bf16.mxu0 0
      %237 = vmatpush1.bf16.msra.mxu0 0
      %238 = vmatprep.subr.bf16.mxu0 0
      %239 = vmatpush1.bf16.msra.mxu0 0
      %240 = vmatprep.mubr.bf16.mxu0 0
      %241 = vmatmul.mubr.bf16.gmra.mrb[0].mxu0 %v202
      %v242 = vpop.f32.mrb[0].mxu0
      %v243 = vadd.f32 0.0, %v242
      %v244 = vpop.f32.mrb[0].mxu0
      %v245 = vpop.f32.mrb[0].mxu0
      %v246 = vpop.f32.mrb[0].mxu0
      %247 = vdwg.mxu0
      %248 = vrot.lane.b32.xlu0 %v136, 120
      %v249 = vpop.permute.xlu0 %248
      %250 = vrot.lane.b32.xlu0 %v136, 88
      %v251 = vpop.permute.xlu0 %250
      %v253 = vsel %vm139, %v249, 0
      %v256 = vsel %vm139, %v251, 0
      %258 = vmatprep.subr.bf16.mxu0 0
      %259 = vmatpush1.bf16.xpose.msra.mxu0 %v256
      %260 = vmatprep.subr.bf16.mxu0 0
      %261 = vmatpush1.bf16.xpose.msra.mxu0 0
      %262 = vmatprep.subr.bf16.mxu0 0
      %263 = vmatpush1.bf16.xpose.msra.mxu0 0
      %264 = vmatprep.subr.bf16.mxu0 0
      %265 = vmatpush1.bf16.xpose.msra.mxu0 0
      %266 = vmatprep.subr.bf16.mxu0 0
      %267 = vmatpush1.bf16.xpose.msra.mxu0 0
      %268 = vmatprep.subr.bf16.mxu0 0
      %269 = vmatpush1.bf16.xpose.msra.mxu0 0
      %270 = vmatprep.subr.bf16.mxu0 0
      %271 = vmatpush1.bf16.xpose.msra.mxu0 0
      %272 = vmatprep.subr.bf16.mxu0 0
      %273 = vmatpush1.bf16.xpose.msra.mxu0 0
      %274 = vmatprep.subr.bf16.mxu0 0
      %275 = vmatpush1.bf16.xpose.msra.mxu0 0
      %276 = vmatprep.subr.bf16.mxu0 0
      %277 = vmatpush1.bf16.xpose.msra.mxu0 0
      %278 = vmatprep.subr.bf16.mxu0 0
      %279 = vmatpush1.bf16.xpose.msra.mxu0 0
      %280 = vmatprep.subr.bf16.mxu0 0
      %281 = vmatpush1.bf16.xpose.msra.mxu0 0
      %282 = vmatprep.subr.bf16.mxu0 0
      %283 = vmatpush1.bf16.xpose.msra.mxu0 0
      %284 = vmatprep.subr.bf16.mxu0 0
      %285 = vmatpush1.bf16.xpose.msra.mxu0 0
      %286 = vmatprep.subr.bf16.mxu0 0
      %287 = vmatpush1.bf16.xpose.msra.mxu0 0
      %288 = vmatprep.subr.bf16.mxu0 0
      %289 = vmatpush1.bf16.xpose.msra.mxu0 0
      %290 = vmatprep.mubr.bf16.mxu0 0
      %291 = vmatmul.mubr.bf16.gmra.mrb[0].mxu0 %v253
      %v292 = vpop.f32.mrb[0].mxu0
      %v293 = vadd.f32 0.0, %v292
      %v294 = vpop.f32.mrb[0].mxu0
      %v295 = vpop.f32.mrb[0].mxu0
      %v296 = vpop.f32.mrb[0].mxu0
      %297 = vdwg.mxu0
      %v298 = vmul.f32 %v293, 0.35355338
      %v299 = vsel %vm139, %v298, -inf
      %300 = vmax.xlane.f32.xlu0 %v299
      %v301 = vpop.xlane.xlu0 %300
      %v302 = vsub.f32 %v298, %v301
      %v303 = vmul.f32 %v302, 1.442695
      %v304 = vpow.pop %v303
      %v305 = vsel %vm139, %v304, 0.0
      %306 = vadd.xlane.f32.xlu0 %v305
      %v307 = vpop.xlane.xlu0 %306
      %v308 = vrcp.pop %v307
      %v309 = vmul.f32 %v304, %v308
      %v310 = vpack.c.bf16 %v309, %v309
      %311 = vrot.lane.b32.xlu0 %v136, 56
      %v312 = vpop.permute.xlu0 %311
      %v314 = vsel %vm139, %v310, 0
      %v317 = vsel %vm204, %v312, 0
      %319 = vmatprep.subr.bf16.mxu0 0
      %320 = vmatpush1.bf16.msra.mxu0 %v317
      %321 = vmatprep.subr.bf16.mxu0 0
      %322 = vmatpush1.bf16.msra.mxu0 0
      %323 = vmatprep.subr.bf16.mxu0 0
      %324 = vmatpush1.bf16.msra.mxu0 0
      %325 = vmatprep.subr.bf16.mxu0 0
      %326 = vmatpush1.bf16.msra.mxu0 0
      %327 = vmatprep.subr.bf16.mxu0 0
      %328 = vmatpush1.bf16.msra.mxu0 0
      %329 = vmatprep.subr.bf16.mxu0 0
      %330 = vmatpush1.bf16.msra.mxu0 0
      %331 = vmatprep.subr.bf16.mxu0 0
      %332 = vmatpush1.bf16.msra.mxu0 0
      %333 = vmatprep.subr.bf16.mxu0 0
      %334 = vmatpush1.bf16.msra.mxu0 0
      %335 = vmatprep.subr.bf16.mxu0 0
      %336 = vmatpush1.bf16.msra.mxu0 0
      %337 = vmatprep.subr.bf16.mxu0 0
      %338 = vmatpush1.bf16.msra.mxu0 0
      %339 = vmatprep.subr.bf16.mxu0 0
      %340 = vmatpush1.bf16.msra.mxu0 0
      %341 = vmatprep.subr.bf16.mxu0 0
      %342 = vmatpush1.bf16.msra.mxu0 0
      %343 = vmatprep.subr.bf16.mxu0 0
      %344 = vmatpush1.bf16.msra.mxu0 0
      %345 = vmatprep.subr.bf16.mxu0 0
      %346 = vmatpush1.bf16.msra.mxu0 0
      %347 = vmatprep.subr.bf16.mxu0 0
      %348 = vmatpush1.bf16.msra.mxu0 0
      %349 = vmatprep.subr.bf16.mxu0 0
      %350 = vmatpush1.bf16.msra.mxu0 0
      %351 = vmatprep.mubr.bf16.mxu0 0
      %352 = vmatmul.mubr.bf16.gmra.mrb[0].mxu0 %v314
      %v353 = vpop.f32.mrb[0].mxu0
      %v354 = vadd.f32 0.0, %v353
      %v355 = vpop.f32.mrb[0].mxu0
      %v356 = vpop.f32.mrb[0].mxu0
      %v357 = vpop.f32.mrb[0].mxu0
      %358 = vdwg.mxu0
      %359 = vrot.lane.b32.xlu0 %v136, 112
      %v360 = vpop.permute.xlu0 %359
      %361 = vrot.lane.b32.xlu0 %v136, 80
      %v362 = vpop.permute.xlu0 %361
      %v364 = vsel %vm139, %v360, 0
      %v367 = vsel %vm139, %v362, 0
      %369 = vmatprep.subr.bf16.mxu0 0
      %370 = vmatpush1.bf16.xpose.msra.mxu0 %v367
      %371 = vmatprep.subr.bf16.mxu0 0
      %372 = vmatpush1.bf16.xpose.msra.mxu0 0
      %373 = vmatprep.subr.bf16.mxu0 0
      %374 = vmatpush1.bf16.xpose.msra.mxu0 0
      %375 = vmatprep.subr.bf16.mxu0 0
      %376 = vmatpush1.bf16.xpose.msra.mxu0 0
      %377 = vmatprep.subr.bf16.mxu0 0
      %378 = vmatpush1.bf16.xpose.msra.mxu0 0
      %379 = vmatprep.subr.bf16.mxu0 0
      %380 = vmatpush1.bf16.xpose.msra.mxu0 0
      %381 = vmatprep.subr.bf16.mxu0 0
      %382 = vmatpush1.bf16.xpose.msra.mxu0 0
      %383 = vmatprep.subr.bf16.mxu0 0
      %384 = vmatpush1.bf16.xpose.msra.mxu0 0
      %385 = vmatprep.subr.bf16.mxu0 0
      %386 = vmatpush1.bf16.xpose.msra.mxu0 0
      %387 = vmatprep.subr.bf16.mxu0 0
      %388 = vmatpush1.bf16.xpose.msra.mxu0 0
      %389 = vmatprep.subr.bf16.mxu0 0
      %390 = vmatpush1.bf16.xpose.msra.mxu0 0
      %391 = vmatprep.subr.bf16.mxu0 0
      %392 = vmatpush1.bf16.xpose.msra.mxu0 0
      %393 = vmatprep.subr.bf16.mxu0 0
      %394 = vmatpush1.bf16.xpose.msra.mxu0 0
      %395 = vmatprep.subr.bf16.mxu0 0
      %396 = vmatpush1.bf16.xpose.msra.mxu0 0
      %397 = vmatprep.subr.bf16.mxu0 0
      %398 = vmatpush1.bf16.xpose.msra.mxu0 0
      %399 = vmatprep.subr.bf16.mxu0 0
      %400 = vmatpush1.bf16.xpose.msra.mxu0 0
      %401 = vmatprep.mubr.bf16.mxu0 0
      %402 = vmatmul.mubr.bf16.gmra.mrb[0].mxu0 %v364
      %v403 = vpop.f32.mrb[0].mxu0
      %v404 = vadd.f32 0.0, %v403
      %v405 = vpop.f32.mrb[0].mxu0
      %v406 = vpop.f32.mrb[0].mxu0
      %v407 = vpop.f32.mrb[0].mxu0
      %408 = vdwg.mxu0
      %v409 = vmul.f32 %v404, 0.35355338
      %v410 = vsel %vm139, %v409, -inf
      %411 = vmax.xlane.f32.xlu0 %v410
      %v412 = vpop.xlane.xlu0 %411
      %v413 = vsub.f32 %v409, %v412
      %v414 = vmul.f32 %v413, 1.442695
      %v415 = vpow.pop %v414
      %v416 = vsel %vm139, %v415, 0.0
      %417 = vadd.xlane.f32.xlu0 %v416
      %v418 = vpop.xlane.xlu0 %417
      %v419 = vrcp.pop %v418
      %v420 = vmul.f32 %v415, %v419
      %v421 = vpack.c.bf16 %v420, %v420
      %422 = vrot.lane.b32.xlu0 %v136, 48
      %v423 = vpop.permute.xlu0 %422
      %v425 = vsel %vm139, %v421, 0
      %v428 = vsel %vm204, %v423, 0
      %430 = vmatprep.subr.bf16.mxu0 0
      %431 = vmatpush1.bf16.msra.mxu0 %v428
      %432 = vmatprep.subr.bf16.mxu0 0
      %433 = vmatpush1.bf16.msra.mxu0 0
      %434 = vmatprep.subr.bf16.mxu0 0
      %435 = vmatpush1.bf16.msra.mxu0 0
      %436 = vmatprep.subr.bf16.mxu0 0
      %437 = vmatpush1.bf16.msra.mxu0 0
      %438 = vmatprep.subr.bf16.mxu0 0
      %439 = vmatpush1.bf16.msra.mxu0 0
      %440 = vmatprep.subr.bf16.mxu0 0
      %441 = vmatpush1.bf16.msra.mxu0 0
      %442 = vmatprep.subr.bf16.mxu0 0
      %443 = vmatpush1.bf16.msra.mxu0 0
      %444 = vmatprep.subr.bf16.mxu0 0
      %445 = vmatpush1.bf16.msra.mxu0 0
      %446 = vmatprep.subr.bf16.mxu0 0
      %447 = vmatpush1.bf16.msra.mxu0 0
      %448 = vmatprep.subr.bf16.mxu0 0
      %449 = vmatpush1.bf16.msra.mxu0 0
      %450 = vmatprep.subr.bf16.mxu0 0
      %451 = vmatpush1.bf16.msra.mxu0 0
      %452 = vmatprep.subr.bf16.mxu0 0
      %453 = vmatpush1.bf16.msra.mxu0 0
      %454 = vmatprep.subr.bf16.mxu0 0
      %455 = vmatpush1.bf16.msra.mxu0 0
      %456 = vmatprep.subr.bf16.mxu0 0
      %457 = vmatpush1.bf16.msra.mxu0 0
      %458 = vmatprep.subr.bf16.mxu0 0
      %459 = vmatpush1.bf16.msra.mxu0 0
      %460 = vmatprep.subr.bf16.mxu0 0
      %461 = vmatpush1.bf16.msra.mxu0 0
      %462 = vmatprep.mubr.bf16.mxu0 0
      %463 = vmatmul.mubr.bf16.gmra.mrb[0].mxu0 %v425
      %v464 = vpop.f32.mrb[0].mxu0
      %v465 = vadd.f32 0.0, %v464
      %v466 = vpop.f32.mrb[0].mxu0
      %v467 = vpop.f32.mrb[0].mxu0
      %v468 = vpop.f32.mrb[0].mxu0
      %469 = vdwg.mxu0
      %470 = vrot.lane.b32.xlu0 %v136, 104
      %v471 = vpop.permute.xlu0 %470
      %472 = vrot.lane.b32.xlu0 %v136, 72
      %v473 = vpop.permute.xlu0 %472
      %v475 = vsel %vm139, %v471, 0
      %v478 = vsel %vm139, %v473, 0
      %480 = vmatprep.subr.bf16.mxu0 0
      %481 = vmatpush1.bf16.xpose.msra.mxu0 %v478
      %482 = vmatprep.subr.bf16.mxu0 0
      %483 = vmatpush1.bf16.xpose.msra.mxu0 0
      %484 = vmatprep.subr.bf16.mxu0 0
      %485 = vmatpush1.bf16.xpose.msra.mxu0 0
      %486 = vmatprep.subr.bf16.mxu0 0
      %487 = vmatpush1.bf16.xpose.msra.mxu0 0
      %488 = vmatprep.subr.bf16.mxu0 0
      %489 = vmatpush1.bf16.xpose.msra.mxu0 0
      %490 = vmatprep.subr.bf16.mxu0 0
      %491 = vmatpush1.bf16.xpose.msra.mxu0 0
      %492 = vmatprep.subr.bf16.mxu0 0
      %493 = vmatpush1.bf16.xpose.msra.mxu0 0
      %494 = vmatprep.subr.bf16.mxu0 0
      %495 = vmatpush1.bf16.xpose.msra.mxu0 0
      %496 = vmatprep.subr.bf16.mxu0 0
      %497 = vmatpush1.bf16.xpose.msra.mxu0 0
      %498 = vmatprep.subr.bf16.mxu0 0
      %499 = vmatpush1.bf16.xpose.msra.mxu0 0
      %500 = vmatprep.subr.bf16.mxu0 0
      %501 = vmatpush1.bf16.xpose.msra.mxu0 0
      %502 = vmatprep.subr.bf16.mxu0 0
      %503 = vmatpush1.bf16.xpose.msra.mxu0 0
      %504 = vmatprep.subr.bf16.mxu0 0
      %505 = vmatpush1.bf16.xpose.msra.mxu0 0
      %506 = vmatprep.subr.bf16.mxu0 0
      %507 = vmatpush1.bf16.xpose.msra.mxu0 0
      %508 = vmatprep.subr.bf16.mxu0 0
      %509 = vmatpush1.bf16.xpose.msra.mxu0 0
      %510 = vmatprep.subr.bf16.mxu0 0
      %511 = vmatpush1.bf16.xpose.msra.mxu0 0
      %512 = vmatprep.mubr.bf16.mxu0 0
      %513 = vmatmul.mubr.bf16.gmra.mrb[0].mxu0 %v475
      %v514 = vpop.f32.mrb[0].mxu0
      %v515 = vadd.f32 0.0, %v514
      %v516 = vpop.f32.mrb[0].mxu0
      %v517 = vpop.f32.mrb[0].mxu0
      %v518 = vpop.f32.mrb[0].mxu0
      %519 = vdwg.mxu0
      %v520 = vmul.f32 %v515, 0.35355338
      %v521 = vsel %vm139, %v520, -inf
      %522 = vmax.xlane.f32.xlu0 %v521
      %v523 = vpop.xlane.xlu0 %522
      %v524 = vsub.f32 %v520, %v523
      %v525 = vmul.f32 %v524, 1.442695
      %v526 = vpow.pop %v525
      %v527 = vsel %vm139, %v526, 0.0
      %528 = vadd.xlane.f32.xlu0 %v527
      %v529 = vpop.xlane.xlu0 %528
      %v530 = vrcp.pop %v529
      %v531 = vmul.f32 %v526, %v530
      %v532 = vpack.c.bf16 %v531, %v531
      %533 = vrot.lane.b32.xlu0 %v136, 40
      %v534 = vpop.permute.xlu0 %533
      %v536 = vsel %vm139, %v532, 0
      %v539 = vsel %vm204, %v534, 0
      %541 = vmatprep.subr.bf16.mxu0 0
      %542 = vmatpush1.bf16.msra.mxu0 %v539
      %543 = vmatprep.subr.bf16.mxu0 0
      %544 = vmatpush1.bf16.msra.mxu0 0
      %545 = vmatprep.subr.bf16.mxu0 0
      %546 = vmatpush1.bf16.msra.mxu0 0
      %547 = vmatprep.subr.bf16.mxu0 0
      %548 = vmatpush1.bf16.msra.mxu0 0
      %549 = vmatprep.subr.bf16.mxu0 0
      %550 = vmatpush1.bf16.msra.mxu0 0
      %551 = vmatprep.subr.bf16.mxu0 0
      %552 = vmatpush1.bf16.msra.mxu0 0
      %553 = vmatprep.subr.bf16.mxu0 0
      %554 = vmatpush1.bf16.msra.mxu0 0
      %555 = vmatprep.subr.bf16.mxu0 0
      %556 = vmatpush1.bf16.msra.mxu0 0
      %557 = vmatprep.subr.bf16.mxu0 0
      %558 = vmatpush1.bf16.msra.mxu0 0
      %559 = vmatprep.subr.bf16.mxu0 0
      %560 = vmatpush1.bf16.msra.mxu0 0
      %561 = vmatprep.subr.bf16.mxu0 0
      %562 = vmatpush1.bf16.msra.mxu0 0
      %563 = vmatprep.subr.bf16.mxu0 0
      %564 = vmatpush1.bf16.msra.mxu0 0
      %565 = vmatprep.subr.bf16.mxu0 0
      %566 = vmatpush1.bf16.msra.mxu0 0
      %567 = vmatprep.subr.bf16.mxu0 0
      %568 = vmatpush1.bf16.msra.mxu0 0
      %569 = vmatprep.subr.bf16.mxu0 0
      %570 = vmatpush1.bf16.msra.mxu0 0
      %571 = vmatprep.subr.bf16.mxu0 0
      %572 = vmatpush1.bf16.msra.mxu0 0
      %573 = vmatprep.mubr.bf16.mxu0 0
      %574 = vmatmul.mubr.bf16.gmra.mrb[0].mxu0 %v536
      %v575 = vpop.f32.mrb[0].mxu0
      %v576 = vadd.f32 0.0, %v575
      %v577 = vpop.f32.mrb[0].mxu0
      %v578 = vpop.f32.mrb[0].mxu0
      %v579 = vpop.f32.mrb[0].mxu0
      %580 = vdwg.mxu0
      %582 = vrot.lane.b32.xlu0 %v354, 8
      %v583 = vpop.permute.xlu0 %582
      %586 = vrot.lane.b32.xlu0 %v465, 16
      %v587 = vpop.permute.xlu0 %586
      %590 = vrot.lane.b32.xlu0 %v576, 24
      %v591 = vpop.permute.xlu0 %590
      %v593 = vsel %vm139, %v243, %v583
      %vm594 = vcmask 130048
      %v595 = vsel %vm594, %v593, %v587
      %vm596 = vcmask 195584
      %v597 = vsel %vm596, %v595, %v591
      %v598 = vpack.c.bf16 %v597, %v597
      %vm599 = vcmask 257024
      %600 = vst.msk [vmem:[%s131] sm:$0xf] %vm599, %v598
      %p601 = scmp.lt.s32.totalorder %s16, 1
      %s602 = scalar_select %p601, %s16, 1
      %p603 = scmp.lt.s32.totalorder %s17, 0
      %s604 = scalar_select %p603, %s17, 0
      %s605 = sadd.s32 %s604, %s602
      %s606 = smul.addr %s605, 4
      %s607 = scalar_lea.vmem %s1, %s606
      // Predicated region
      $region25: #{bert_forward.12} parent=23 // pred_check
        %p608 = pneg %p70
      $region26: #{bert_forward.12} parent=23 // pred_check_branch
        %610 = sbr.rel (%p608) target = $region28
      $region27: #{bert_forward.12} parent=23 // pred_region
        _
      $region28: #{bert_forward.12} parent=23 // pred_fallthru
        _
    $region24: #{bert_forward.12} parent=5 // pred_fallthru
      _
    %p611 = scmp.le.s32.totalorder 2, %s7
    // Predicated region
    $region29: #{bert_forward.12} parent=5 // pred_check
      %p612 = pneg %p611
    $region30: #{bert_forward.12} parent=5 // pred_check_branch
      %614 = sbr.rel (%p612) target = $region32
    $region31: #{bert_forward.12} parent=5 // pred_region
      %s615 = ssub.s32 %s7, 2
      // Predicated region
      $region33: #{bert_forward.12} parent=31 // pred_check
        %p616 = pneg %p76
      $region34: #{bert_forward.12} parent=31 // pred_check_branch
        %618 = sbr.rel (%p616) target = $region36
      $region35: #{bert_forward.12} parent=31 // pred_region
        %p619 = scmp.lt.s32.totalorder %s18, 1
        %s620 = scalar_select %p619, %s18, 1
        %p621 = scmp.lt.s32.totalorder %s19, 0
        %s622 = scalar_select %p621, %s19, 0
        %s623 = sadd.s32 %s622, %s620
        %s624 = smul.addr %s623, 4
        %s625 = scalar_lea.vmem %s1, %s624
      $region36: #{bert_forward.12} parent=31 // pred_fallthru
        _
    $region32: #{bert_forward.12} parent=5 // pred_fallthru
      _
  $region6: #{bert_forward.12} parent=0 // loop_footer
    %s11 = sadd.s32 1, %s7
  $region7: #{bert_forward.12} parent=0 // loop_footer_branch
    %6 = sbr.rel target = $region3
  $region8: #{bert_forward.12} parent=0 // loop_exit
    _

// kernel: bert_forward.21
$region0: #{bert_forward.21}
  #allocation0 [shape = 'u32[]', space=smem, size = 0x4, offset = 0x4, fixed_abs, tag = 'smem constant byte address 0x4 - core index']
  #allocation1 [shape = 'u32[144,128]{1,0:T(1,128)}', space=vmem, size = 0x12000, scoped, tag = 'internal scratch']
  %s0 = inlined_call_operand.vmem [shape: bf16[16,32], index: 0, kind: input, shape index: {}]
  %s1 = inlined_call_operand.vmem [shape: bf16[32,128], index: 1, kind: input, shape index: {}]
  %s2 = inlined_call_operand.vmem [shape: f32[1,128], index: 2, kind: input, shape index: {}]
  %s3 = inlined_call_operand.vmem [shape: f32[16,128], index: 3, kind: output, shape index: {}]
  %s4 = sld [smem:[#allocation0]]
  $region22: #{bert_forward.21} parent=0
    _
  %s6 = ssub.s32 1, %s4
  %s7 = scalar_select 0, %s6, %s4
  // Predicated region
  $region2: #{bert_forward.21} parent=0 // pred_check
    _
  $region3: #{bert_forward.21} parent=0 // pred_check_branch
    %9 = sbr.rel (0) target = $region5
  $region4: #{bert_forward.21} parent=0 // pred_region
    _
  $region5: #{bert_forward.21} parent=0 // pred_fallthru
    _
  // Predicated region
  $region6: #{bert_forward.21} parent=0 // pred_check
    _
  $region7: #{bert_forward.21} parent=0 // pred_check_branch
    %11 = sbr.rel (0) target = $region9
  $region8: #{bert_forward.21} parent=0 // pred_region
    _
  $region9: #{bert_forward.21} parent=0 // pred_fallthru
    _
  // Predicated region
  $region10: #{bert_forward.21} parent=0 // pred_check
    _
  $region11: #{bert_forward.21} parent=0 // pred_check_branch
    %13 = sbr.rel (0) target = $region13
  $region12: #{bert_forward.21} parent=0 // pred_region
    _
  $region13: #{bert_forward.21} parent=0 // pred_fallthru
    _
  %v15 = vld [vmem:[%s0] sm:$0xf]
  %v16 = vld [vmem:[%s0 + $0x4] sm:$0xf]
  %v17 = vld [vmem:[%s1] sm:$0xf]
  %v18 = vld [vmem:[%s1 + $0x4] sm:$0xf]
  %v19 = vld [vmem:[%s1 + $0x8] sm:$0xf]
  %v20 = vld [vmem:[%s1 + $0xc] sm:$0xf]
  %v21 = vld [vmem:[%s2] sm:$0x1]
  %v23 = vlaneseq
  %v24 = vshrl.u32 %v23, 7
  %v25 = vsub.s32 0, %v24
  %v26 = vrot.slane %v21, %v25
  %v30 = vunpack.c.l.b16 %v15
  %v31 = vunpack.c.l.b16 %v16
  %v32 = vpack.c.b16 %v31, %v30
  %v37 = vunpack.c.l.b16 %v17
  %v38 = vunpack.c.l.b16 %v18
  %v39 = vunpack.c.l.b16 %v19
  %v40 = vunpack.c.l.b16 %v20
  %v41 = vpack.c.b16 %v38, %v37
  %v42 = vpack.c.b16 %v40, %v39
  %vm45 = vcmask 261120
  %v47 = vsel %vm45, %v32, 0
  %49 = vmatprep.subr.bf16.mxu0 0
  %50 = vmatpush1.bf16.msra.mxu0 %v41
  %51 = vmatprep.subr.bf16.mxu0 0
  %52 = vmatpush1.bf16.msra.mxu0 %v42
  %53 = vmatprep.subr.bf16.mxu0 0
  %54 = vmatpush1.bf16.msra.mxu0 0
  %55 = vmatprep.subr.bf16.mxu0 0
  %56 = vmatpush1.bf16.msra.mxu0 0
  %57 = vmatprep.subr.bf16.mxu0 0
  %58 = vmatpush1.bf16.msra.mxu0 0
  %59 = vmatprep.subr.bf16.mxu0 0
  %60 = vmatpush1.bf16.msra.mxu0 0
  %61 = vmatprep.subr.bf16.mxu0 0
  %62 = vmatpush1.bf16.msra.mxu0 0
  %63 = vmatprep.subr.bf16.mxu0 0
  %64 = vmatpush1.bf16.msra.mxu0 0
  %65 = vmatprep.subr.bf16.mxu0 0
  %66 = vmatpush1.bf16.msra.mxu0 0
  %67 = vmatprep.subr.bf16.mxu0 0
  %68 = vmatpush1.bf16.msra.mxu0 0
  %69 = vmatprep.subr.bf16.mxu0 0
  %70 = vmatpush1.bf16.msra.mxu0 0
  %71 = vmatprep.subr.bf16.mxu0 0
  %72 = vmatpush1.bf16.msra.mxu0 0
  %73 = vmatprep.subr.bf16.mxu0 0
  %74 = vmatpush1.bf16.msra.mxu0 0
  %75 = vmatprep.subr.bf16.mxu0 0
  %76 = vmatpush1.bf16.msra.mxu0 0
  %77 = vmatprep.subr.bf16.mxu0 0
  %78 = vmatpush1.bf16.msra.mxu0 0
  %79 = vmatprep.subr.bf16.mxu0 0
  %80 = vmatpush1.bf16.msra.mxu0 0
  %81 = vmatprep.mubr.bf16.mxu0 0
  %82 = vmatmul.mubr.bf16.gmra.mrb[0].mxu0 %v47
  %v83 = vpop.f32.mrb[0].mxu0
  %v84 = vadd.f32 %v26, %v83
  %v85 = vpop.f32.mrb[0].mxu0
  %v86 = vpop.f32.mrb[0].mxu0
  %v87 = vadd.f32 %v26, %v86
  %v88 = vpop.f32.mrb[0].mxu0
  %89 = vdwg.mxu0
  %90 = vst [vmem:[%s3] sm:$0xff] %v84
  %91 = vst [vmem:[%s3 + $0x8] sm:$0xff] %v87
  // Predicated region
  $region14: #{bert_forward.21} parent=0 // pred_check
    _
  $region15: #{bert_forward.21} parent=0 // pred_check_branch
    %93 = sbr.rel (0) target = $region17
  $region16: #{bert_forward.21} parent=0 // pred_region
    _
  $region17: #{bert_forward.21} parent=0 // pred_fallthru
    _
  // Predicated region
  $region18: #{bert_forward.21} parent=0 // pred_check
    _
  $region19: #{bert_forward.21} parent=0 // pred_check_branch
    %95 = sbr.rel (0) target = $region21
  $region20: #{bert_forward.21} parent=0 // pred_region
    _
  $region21: #{bert_forward.21} parent=0 // pred_fallthru
    _

</llo_original>
